<compile_context>
chip_gen: v7x
topology: tpu7x:2x2x1
jax: 0.10.0
libtpu: 0.0.40
codegen_flags: <defaults>
</compile_context>

<pallas_src>
import jax
import jax.numpy as jnp
import numpy as np
from jax import lax
from jax.experimental import pallas as pl
from jax.experimental.pallas import tpu as pltpu

# Small shapes consistent with the module structure.
B, C, H, W = 4, 128, 8, 8          # batch, channels (in_ch), spatial
HW = H * W
HID1, HID2, NUM_CLASSES = 128, 128, 9
NPAD = 128                          # lane-dense padded logits width
K2 = 9                              # 3x3 taps
BN_EPS = 1e-5


# ---------------------------------------------------------------------------
# Single fused kernel: conv (im2col GEMM) + BN + ReLU6 + global-avg-pool
#                      + fc1/bn1/relu + fc2/bn2/relu + fc3 (padded logits).
# Everything lives in VMEM for the single grid step (~1.2 MiB total).
# ---------------------------------------------------------------------------
def fused_mlp_kernel(xcol_ref, wconv_ref, w1_ref, w2_ref, w3_ref, vec_ref,
                     out_ref, pooled_ref):
    # xcol_ref:   (B*HW, 9*C) bf16   im2col'd, SAME-padded input
    # wconv_ref:  (9*C, C)    bf16   conv weight, tap-major (kh*3+kw, Cin, Cout)
    # w1/w2:      (128, 128)  bf16
    # w3:         (128, 128)  bf16   (columns 9..127 are zero)
    # vec_ref:    (9, 128)    f32    rows = [conv_scale, conv_shift,
    #                                        b1, s1, t1, b2, s2, t2, b3_pad]
    # out_ref:    (B, 128)    f32    padded logits
    # pooled_ref: (8, 128)    f32    VMEM scratch for the pooled activations

    # --- Conv3x3 as one 256x1152x128 MXU GEMM + folded BN + ReLU6 ----------
    y = jnp.dot(xcol_ref[...], wconv_ref[...],
                preferred_element_type=jnp.float32)            # (B*HW, C) f32
    y = jnp.clip(y * vec_ref[0:1, :] + vec_ref[1:2, :], 0.0, 6.0)

    # --- AdaptiveAvgPool2d(1): per-image sublane-sum (exact f32) -----------
    inv = 1.0 / HW
    for b in range(B):                                          # static unroll
        pooled_ref[b:b + 1, :] = jnp.sum(y[b * HW:(b + 1) * HW, :],
                                         axis=0, keepdims=True) * inv
    pooled = pooled_ref[0:B, :]                                 # (B, C) f32

    # --- fc1 + bn1 + ReLU ---------------------------------------------------
    h = jnp.dot(pooled.astype(jnp.bfloat16), w1_ref[...],
                preferred_element_type=jnp.float32) + vec_ref[2:3, :]
    h = jnp.maximum(h * vec_ref[3:4, :] + vec_ref[4:5, :], 0.0)

    # --- fc2 + bn2 + ReLU ---------------------------------------------------
    h = jnp.dot(h.astype(jnp.bfloat16), w2_ref[...],
                preferred_element_type=jnp.float32) + vec_ref[5:6, :]
    h = jnp.maximum(h * vec_ref[6:7, :] + vec_ref[7:8, :], 0.0)

    # --- fc3: lane-dense padded logits --------------------------------------
    out_ref[...] = jnp.dot(h.astype(jnp.bfloat16), w3_ref[...],
                           preferred_element_type=jnp.float32) + vec_ref[8:9, :]


def mlp_forward(x_nchw, kp):
    # NCHW -> NHWC, SAME pad + im2col in the XLA wrapper (one-time layout
    # work; avoids 9 tile-crossing slice+reshape copies inside the kernel).
    x_nhwc = jnp.transpose(x_nchw, (0, 2, 3, 1))
    x_pad = jnp.pad(x_nhwc, ((0, 0), (1, 1), (1, 1), (0, 0)))
    cols = jnp.concatenate(
        [x_pad[:, kh:kh + H, kw:kw + W, :] for kh in range(3) for kw in range(3)],
        axis=-1)                                               # (B, H, W, 9C)
    xcol = cols.reshape(B * HW, K2 * C).astype(jnp.bfloat16)   # (256, 1152)

    out = pl.pallas_call(
        fused_mlp_kernel,
        out_shape=jax.ShapeDtypeStruct((B, NPAD), jnp.float32),
        grid=(1,),
        in_specs=[
            pl.BlockSpec((B * HW, K2 * C), lambda i: (0, 0)),
            pl.BlockSpec((K2 * C, C), lambda i: (0, 0)),
            pl.BlockSpec((C, HID1), lambda i: (0, 0)),
            pl.BlockSpec((HID1, HID2), lambda i: (0, 0)),
            pl.BlockSpec((HID2, NPAD), lambda i: (0, 0)),
            pl.BlockSpec((9, NPAD), lambda i: (0, 0)),
        ],
        out_specs=pl.BlockSpec((B, NPAD), lambda i: (0, 0)),
        scratch_shapes=[pltpu.VMEM((8, C), jnp.float32)],
    )(xcol, kp["wconv"], kp["w1b"], kp["w2b"], kp["w3b"], kp["vecs"])
    return out[:, :NUM_CLASSES]                                # (B, 9)


# ---------------------------------------------------------------------------
# Parameter setup (deterministic, synthetic), BN folding and weight packing.
# ---------------------------------------------------------------------------
def fold_bn(gamma, beta, mean, var):
    scale = gamma / jnp.sqrt(var + BN_EPS)
    shift = beta - mean * scale
    return scale, shift


def make_params(key):
    ks = jax.random.split(key, 20)
    p = {}
    # ConvBNReLU
    p["conv_w"] = jax.random.normal(ks[0], (K2, C, C), jnp.float32) * 0.05
    p["conv_scale"], p["conv_shift"] = fold_bn(
        1.0 + 0.1 * jax.random.normal(ks[1], (C,)),
        0.1 * jax.random.normal(ks[2], (C,)),
        0.1 * jax.random.normal(ks[3], (C,)),
        jax.random.uniform(ks[4], (C,), minval=0.5, maxval=1.5))
    # fc1 / bn1
    p["w1"] = jax.random.normal(ks[5], (C, HID1), jnp.float32) * 0.05
    p["b1"] = 0.1 * jax.random.normal(ks[6], (HID1,))
    p["s1"], p["t1"] = fold_bn(
        1.0 + 0.1 * jax.random.normal(ks[7], (HID1,)),
        0.1 * jax.random.normal(ks[8], (HID1,)),
        0.1 * jax.random.normal(ks[9], (HID1,)),
        jax.random.uniform(ks[10], (HID1,), minval=0.5, maxval=1.5))
    # fc2 / bn2
    p["w2"] = jax.random.normal(ks[11], (HID1, HID2), jnp.float32) * 0.05
    p["b2"] = 0.1 * jax.random.normal(ks[12], (HID2,))
    p["s2"], p["t2"] = fold_bn(
        1.0 + 0.1 * jax.random.normal(ks[13], (HID2,)),
        0.1 * jax.random.normal(ks[14], (HID2,)),
        0.1 * jax.random.normal(ks[15], (HID2,)),
        jax.random.uniform(ks[16], (HID2,), minval=0.5, maxval=1.5))
    # fc3
    p["w3"] = jax.random.normal(ks[17], (HID2, NUM_CLASSES), jnp.float32) * 0.05
    p["b3"] = 0.1 * jax.random.normal(ks[18], (NUM_CLASSES,))
    return p


def pack_params(p):
    """One-time packing of weights into kernel-ready (bf16 / lane-dense) form."""
    k = {}
    k["wconv"] = p["conv_w"].reshape(K2 * C, C).astype(jnp.bfloat16)
    k["w1b"] = p["w1"].astype(jnp.bfloat16)
    k["w2b"] = p["w2"].astype(jnp.bfloat16)
    w3p = jnp.zeros((HID2, NPAD), jnp.float32).at[:, :NUM_CLASSES].set(p["w3"])
    k["w3b"] = w3p.astype(jnp.bfloat16)
    b3p = jnp.zeros((NPAD,), jnp.float32).at[:NUM_CLASSES].set(p["b3"])
    k["vecs"] = jnp.stack(
        [p["conv_scale"], p["conv_shift"],
         p["b1"], p["s1"], p["t1"],
         p["b2"], p["s2"], p["t2"], b3p], axis=0).astype(jnp.float32)
    return k


# ---------------------------------------------------------------------------
# Pure-JAX reference (same bf16-operand / f32-accumulate math).
# ---------------------------------------------------------------------------
def reference_forward(x_nchw, p):
    x_nhwc = jnp.transpose(x_nchw, (0, 2, 3, 1)).astype(jnp.bfloat16)
    w_hwio = p["conv_w"].reshape(3, 3, C, C).astype(jnp.bfloat16)
    y = lax.conv_general_dilated(x_nhwc, w_hwio, (1, 1), "SAME",
                                 dimension_numbers=("NHWC", "HWIO", "NHWC"),
                                 preferred_element_type=jnp.float32)
    y = jnp.clip(y * p["conv_scale"] + p["conv_shift"], 0.0, 6.0)
    pooled = jnp.mean(y, axis=(1, 2))

    def mm(a, w):
        return jnp.dot(a.astype(jnp.bfloat16), w.astype(jnp.bfloat16),
                       preferred_element_type=jnp.float32)

    h = jnp.maximum((mm(pooled, p["w1"]) + p["b1"]) * p["s1"] + p["t1"], 0.0)
    h = jnp.maximum((mm(h, p["w2"]) + p["b2"]) * p["s2"] + p["t2"], 0.0)
    return mm(h, p["w3"]) + p["b3"]


if __name__ == "__main__":
    key = jax.random.PRNGKey(0)
    kx, kp_key = jax.random.split(key)
    # PyTorch-convention input: NCHW
    x = jax.random.normal(kx, (B, C, H, W), jnp.float32)
    params = make_params(kp_key)
    kparams = pack_params(params)

    logits = jax.block_until_ready(mlp_forward(x, kparams))
    ref = jax.block_until_ready(reference_forward(x, params))

    assert logits.shape == (B, NUM_CLASSES)
    np.testing.assert_allclose(np.asarray(logits), np.asarray(ref),
                               rtol=2e-3, atol=2e-3)
    print("KERNEL_OK")
</pallas_src>

<mosaic_0001>
module attributes {stable_mosaic.version = 11 : i64} {
  func.func @fused_mlp_kernel(%arg0: i32, %arg1: memref<256x1152xbf16, #tpu.memory_space<vmem>>, %arg2: memref<1152x128xbf16, #tpu.memory_space<vmem>>, %arg3: memref<128x128xbf16, #tpu.memory_space<vmem>>, %arg4: memref<128x128xbf16, #tpu.memory_space<vmem>>, %arg5: memref<128x128xbf16, #tpu.memory_space<vmem>>, %arg6: memref<9x128xf32, #tpu.memory_space<vmem>>, %arg7: memref<4x128xf32, #tpu.memory_space<vmem>>, %arg8: memref<8x128xf32, #tpu.memory_space<vmem>>) attributes {dimension_semantics = [#tpu.dimension_semantics<arbitrary>], iteration_bounds = array<i64: 1>, scalar_prefetch = 0 : i64, scratch_operands = 1 : i64, tpu.core_type = #tpu.core_type<tc>, window_params = [{pipeline_mode = #tpu.pipeline_mode<synchronous>, transform_indices = @transform_0, window_bounds = array<i64: 256, 1152>}, {pipeline_mode = #tpu.pipeline_mode<synchronous>, transform_indices = @transform_1, window_bounds = array<i64: 1152, 128>}, {pipeline_mode = #tpu.pipeline_mode<synchronous>, transform_indices = @transform_2, window_bounds = array<i64: 128, 128>}, {pipeline_mode = #tpu.pipeline_mode<synchronous>, transform_indices = @transform_3, window_bounds = array<i64: 128, 128>}, {pipeline_mode = #tpu.pipeline_mode<synchronous>, transform_indices = @transform_4, window_bounds = array<i64: 128, 128>}, {pipeline_mode = #tpu.pipeline_mode<synchronous>, transform_indices = @transform_5, window_bounds = array<i64: 9, 128>}, {pipeline_mode = #tpu.pipeline_mode<synchronous>, transform_indices = @transform_6, window_bounds = array<i64: 4, 128>}]} {
    %c0 = arith.constant 0 : index
    %c0_0 = arith.constant 0 : index
    %0 = vector.load %arg1[%c0, %c0_0] : memref<256x1152xbf16, #tpu.memory_space<vmem>>, vector<256x1152xbf16>
    %c0_1 = arith.constant 0 : index
    %c0_2 = arith.constant 0 : index
    %1 = vector.load %arg2[%c0_1, %c0_2] : memref<1152x128xbf16, #tpu.memory_space<vmem>>, vector<1152x128xbf16>
    %cst = arith.constant dense<0.000000e+00> : vector<256x128xf32>
    %2 = tpu.matmul %0, %1, %cst {dimension_numbers = #tpu.dot_dimension_numbers<[1], [0], [0], [1], [0, 0, 1, 1], [], []>} : vector<256x1152xbf16>, vector<1152x128xbf16>, vector<256x128xf32> -> vector<256x128xf32>
    %c0_3 = arith.constant 0 : index
    %c0_4 = arith.constant 0 : index
    %3 = vector.load %arg6[%c0_3, %c0_4] : memref<9x128xf32, #tpu.memory_space<vmem>>, vector<1x128xf32>
    %4 = vector.broadcast %3 : vector<1x128xf32> to vector<256x128xf32>
    %5 = arith.mulf %2, %4 : vector<256x128xf32>
    %c1 = arith.constant 1 : index
    %c0_5 = arith.constant 0 : index
    %6 = vector.load %arg6[%c1, %c0_5] : memref<9x128xf32, #tpu.memory_space<vmem>>, vector<1x128xf32>
    %7 = vector.broadcast %6 : vector<1x128xf32> to vector<256x128xf32>
    %8 = arith.addf %5, %7 : vector<256x128xf32>
    %cst_6 = arith.constant 0.000000e+00 : f32
    %cst_7 = arith.constant 6.000000e+00 : f32
    %9 = vector.broadcast %cst_6 : f32 to vector<256x128xf32>
    %10 = arith.maximumf %9, %8 : vector<256x128xf32>
    %11 = vector.broadcast %cst_7 : f32 to vector<256x128xf32>
    %12 = arith.minimumf %11, %10 : vector<256x128xf32>
    %13 = vector.extract_strided_slice %12 {offsets = [0, 0], sizes = [64, 128], strides = [1, 1]} : vector<256x128xf32> to vector<64x128xf32>
    %cst_8 = arith.constant dense<0.000000e+00> : vector<128xf32>
    %14 = vector.multi_reduction <add>, %13, %cst_8 [0] : vector<64x128xf32> to vector<128xf32>
    %15 = vector.shape_cast %14 : vector<128xf32> to vector<1x128xf32>
    %cst_9 = arith.constant 1.562500e-02 : f32
    %16 = vector.broadcast %cst_9 : f32 to vector<1x128xf32>
    %17 = arith.mulf %15, %16 : vector<1x128xf32>
    %c0_10 = arith.constant 0 : index
    %c0_11 = arith.constant 0 : index
    %18 = vector.load %arg8[%c0_10, %c0_11] : memref<8x128xf32, #tpu.memory_space<vmem>>, vector<1x128xf32>
    tpu.vector_store %arg8[%c0_10, %c0_11], %17 {strides = array<i32>} : memref<8x128xf32, #tpu.memory_space<vmem>>, vector<1x128xf32>,
    %19 = vector.extract_strided_slice %12 {offsets = [64, 0], sizes = [64, 128], strides = [1, 1]} : vector<256x128xf32> to vector<64x128xf32>
    %cst_12 = arith.constant dense<0.000000e+00> : vector<128xf32>
    %20 = vector.multi_reduction <add>, %19, %cst_12 [0] : vector<64x128xf32> to vector<128xf32>
    %21 = vector.shape_cast %20 : vector<128xf32> to vector<1x128xf32>
    %cst_13 = arith.constant 1.562500e-02 : f32
    %22 = vector.broadcast %cst_13 : f32 to vector<1x128xf32>
    %23 = arith.mulf %21, %22 : vector<1x128xf32>
    %c1_14 = arith.constant 1 : index
    %c0_15 = arith.constant 0 : index
    %24 = vector.load %arg8[%c1_14, %c0_15] : memref<8x128xf32, #tpu.memory_space<vmem>>, vector<1x128xf32>
    tpu.vector_store %arg8[%c1_14, %c0_15], %23 {strides = array<i32>} : memref<8x128xf32, #tpu.memory_space<vmem>>, vector<1x128xf32>,
    %25 = vector.extract_strided_slice %12 {offsets = [128, 0], sizes = [64, 128], strides = [1, 1]} : vector<256x128xf32> to vector<64x128xf32>
    %cst_16 = arith.constant dense<0.000000e+00> : vector<128xf32>
    %26 = vector.multi_reduction <add>, %25, %cst_16 [0] : vector<64x128xf32> to vector<128xf32>
    %27 = vector.shape_cast %26 : vector<128xf32> to vector<1x128xf32>
    %cst_17 = arith.constant 1.562500e-02 : f32
    %28 = vector.broadcast %cst_17 : f32 to vector<1x128xf32>
    %29 = arith.mulf %27, %28 : vector<1x128xf32>
    %c2 = arith.constant 2 : index
    %c0_18 = arith.constant 0 : index
    %30 = vector.load %arg8[%c2, %c0_18] : memref<8x128xf32, #tpu.memory_space<vmem>>, vector<1x128xf32>
    tpu.vector_store %arg8[%c2, %c0_18], %29 {strides = array<i32>} : memref<8x128xf32, #tpu.memory_space<vmem>>, vector<1x128xf32>,
    %31 = vector.extract_strided_slice %12 {offsets = [192, 0], sizes = [64, 128], strides = [1, 1]} : vector<256x128xf32> to vector<64x128xf32>
    %cst_19 = arith.constant dense<0.000000e+00> : vector<128xf32>
    %32 = vector.multi_reduction <add>, %31, %cst_19 [0] : vector<64x128xf32> to vector<128xf32>
    %33 = vector.shape_cast %32 : vector<128xf32> to vector<1x128xf32>
    %cst_20 = arith.constant 1.562500e-02 : f32
    %34 = vector.broadcast %cst_20 : f32 to vector<1x128xf32>
    %35 = arith.mulf %33, %34 : vector<1x128xf32>
    %c3 = arith.constant 3 : index
    %c0_21 = arith.constant 0 : index
    %36 = vector.load %arg8[%c3, %c0_21] : memref<8x128xf32, #tpu.memory_space<vmem>>, vector<1x128xf32>
    tpu.vector_store %arg8[%c3, %c0_21], %35 {strides = array<i32>} : memref<8x128xf32, #tpu.memory_space<vmem>>, vector<1x128xf32>,
    %c0_22 = arith.constant 0 : index
    %c0_23 = arith.constant 0 : index
    %37 = vector.load %arg8[%c0_22, %c0_23] : memref<8x128xf32, #tpu.memory_space<vmem>>, vector<4x128xf32>
    %38 = arith.truncf %37 : vector<4x128xf32> to vector<4x128xbf16>
    %c0_24 = arith.constant 0 : index
    %c0_25 = arith.constant 0 : index
    %39 = vector.load %arg3[%c0_24, %c0_25] : memref<128x128xbf16, #tpu.memory_space<vmem>>, vector<128x128xbf16>
    %cst_26 = arith.constant dense<0.000000e+00> : vector<4x128xf32>
    %40 = tpu.matmul %38, %39, %cst_26 {dimension_numbers = #tpu.dot_dimension_numbers<[1], [0], [0], [1], [0, 0, 1, 1], [], []>} : vector<4x128xbf16>, vector<128x128xbf16>, vector<4x128xf32> -> vector<4x128xf32>
    %c2_27 = arith.constant 2 : index
    %c0_28 = arith.constant 0 : index
    %41 = vector.load %arg6[%c2_27, %c0_28] : memref<9x128xf32, #tpu.memory_space<vmem>>, vector<1x128xf32>
    %42 = vector.broadcast %41 : vector<1x128xf32> to vector<4x128xf32>
    %43 = arith.addf %40, %42 : vector<4x128xf32>
    %c3_29 = arith.constant 3 : index
    %c0_30 = arith.constant 0 : index
    %44 = vector.load %arg6[%c3_29, %c0_30] : memref<9x128xf32, #tpu.memory_space<vmem>>, vector<1x128xf32>
    %45 = vector.broadcast %44 : vector<1x128xf32> to vector<4x128xf32>
    %46 = arith.mulf %43, %45 : vector<4x128xf32>
    %c4 = arith.constant 4 : index
    %c0_31 = arith.constant 0 : index
    %47 = vector.load %arg6[%c4, %c0_31] : memref<9x128xf32, #tpu.memory_space<vmem>>, vector<1x128xf32>
    %48 = vector.broadcast %47 : vector<1x128xf32> to vector<4x128xf32>
    %49 = arith.addf %46, %48 : vector<4x128xf32>
    %cst_32 = arith.constant 0.000000e+00 : f32
    %50 = vector.broadcast %cst_32 : f32 to vector<4x128xf32>
    %51 = arith.maximumf %49, %50 : vector<4x128xf32>
    %52 = arith.truncf %51 : vector<4x128xf32> to vector<4x128xbf16>
    %c0_33 = arith.constant 0 : index
    %c0_34 = arith.constant 0 : index
    %53 = vector.load %arg4[%c0_33, %c0_34] : memref<128x128xbf16, #tpu.memory_space<vmem>>, vector<128x128xbf16>
    %cst_35 = arith.constant dense<0.000000e+00> : vector<4x128xf32>
    %54 = tpu.matmul %52, %53, %cst_35 {dimension_numbers = #tpu.dot_dimension_numbers<[1], [0], [0], [1], [0, 0, 1, 1], [], []>} : vector<4x128xbf16>, vector<128x128xbf16>, vector<4x128xf32> -> vector<4x128xf32>
    %c5 = arith.constant 5 : index
    %c0_36 = arith.constant 0 : index
    %55 = vector.load %arg6[%c5, %c0_36] : memref<9x128xf32, #tpu.memory_space<vmem>>, vector<1x128xf32>
    %56 = vector.broadcast %55 : vector<1x128xf32> to vector<4x128xf32>
    %57 = arith.addf %54, %56 : vector<4x128xf32>
    %c6 = arith.constant 6 : index
    %c0_37 = arith.constant 0 : index
    %58 = vector.load %arg6[%c6, %c0_37] : memref<9x128xf32, #tpu.memory_space<vmem>>, vector<1x128xf32>
    %59 = vector.broadcast %58 : vector<1x128xf32> to vector<4x128xf32>
    %60 = arith.mulf %57, %59 : vector<4x128xf32>
    %c7 = arith.constant 7 : index
    %c0_38 = arith.constant 0 : index
    %61 = vector.load %arg6[%c7, %c0_38] : memref<9x128xf32, #tpu.memory_space<vmem>>, vector<1x128xf32>
    %62 = vector.broadcast %61 : vector<1x128xf32> to vector<4x128xf32>
    %63 = arith.addf %60, %62 : vector<4x128xf32>
    %cst_39 = arith.constant 0.000000e+00 : f32
    %64 = vector.broadcast %cst_39 : f32 to vector<4x128xf32>
    %65 = arith.maximumf %63, %64 : vector<4x128xf32>
    %66 = arith.truncf %65 : vector<4x128xf32> to vector<4x128xbf16>
    %c0_40 = arith.constant 0 : index
    %c0_41 = arith.constant 0 : index
    %67 = vector.load %arg5[%c0_40, %c0_41] : memref<128x128xbf16, #tpu.memory_space<vmem>>, vector<128x128xbf16>
    %cst_42 = arith.constant dense<0.000000e+00> : vector<4x128xf32>
    %68 = tpu.matmul %66, %67, %cst_42 {dimension_numbers = #tpu.dot_dimension_numbers<[1], [0], [0], [1], [0, 0, 1, 1], [], []>} : vector<4x128xbf16>, vector<128x128xbf16>, vector<4x128xf32> -> vector<4x128xf32>
    %c8 = arith.constant 8 : index
    %c0_43 = arith.constant 0 : index
    %69 = vector.load %arg6[%c8, %c0_43] : memref<9x128xf32, #tpu.memory_space<vmem>>, vector<1x128xf32>
    %70 = vector.broadcast %69 : vector<1x128xf32> to vector<4x128xf32>
    %71 = arith.addf %68, %70 : vector<4x128xf32>
    %c0_44 = arith.constant 0 : index
    %c0_45 = arith.constant 0 : index
    %72 = vector.load %arg7[%c0_44, %c0_45] : memref<4x128xf32, #tpu.memory_space<vmem>>, vector<4x128xf32>
    tpu.vector_store %arg7[%c0_44, %c0_45], %71 {strides = array<i32>} : memref<4x128xf32, #tpu.memory_space<vmem>>, vector<4x128xf32>,
    return
  }
  func.func @transform_0(%arg0: i32) -> (i32, i32) {
    %c0_i32 = arith.constant 0 : i32
    %c0_i32_0 = arith.constant 0 : i32
    %c0_i32_1 = arith.constant 0 : i32
    return %c0_i32, %c0_i32_0 : i32, i32
  }
  func.func @transform_1(%arg0: i32) -> (i32, i32) {
    %c0_i32 = arith.constant 0 : i32
    %c0_i32_0 = arith.constant 0 : i32
    %c0_i32_1 = arith.constant 0 : i32
    return %c0_i32, %c0_i32_0 : i32, i32
  }
  func.func @transform_2(%arg0: i32) -> (i32, i32) {
    %c0_i32 = arith.constant 0 : i32
    %c0_i32_0 = arith.constant 0 : i32
    %c0_i32_1 = arith.constant 0 : i32
    return %c0_i32, %c0_i32_0 : i32, i32
  }
  func.func @transform_3(%arg0: i32) -> (i32, i32) {
    %c0_i32 = arith.constant 0 : i32
    %c0_i32_0 = arith.constant 0 : i32
    %c0_i32_1 = arith.constant 0 : i32
    return %c0_i32, %c0_i32_0 : i32, i32
  }
  func.func @transform_4(%arg0: i32) -> (i32, i32) {
    %c0_i32 = arith.constant 0 : i32
    %c0_i32_0 = arith.constant 0 : i32
    %c0_i32_1 = arith.constant 0 : i32
    return %c0_i32, %c0_i32_0 : i32, i32
  }
  func.func @transform_5(%arg0: i32) -> (i32, i32) {
    %c0_i32 = arith.constant 0 : i32
    %c0_i32_0 = arith.constant 0 : i32
    %c0_i32_1 = arith.constant 0 : i32
    return %c0_i32, %c0_i32_0 : i32, i32
  }
  func.func @transform_6(%arg0: i32) -> (i32, i32) {
    %c0_i32 = arith.constant 0 : i32
    %c0_i32_0 = arith.constant 0 : i32
    %c0_i32_1 = arith.constant 0 : i32
    return %c0_i32, %c0_i32_0 : i32, i32
  }
}

</mosaic_0001>

<llo_original>
// kernel: tpu_custom_call.1
$region0: #{tpu_custom_call.1}
  #allocation0 [shape = 'u32[]', space=smem, size = 0x4, offset = 0x4, fixed_abs, tag = 'smem constant byte address 0x4 - core index']
  #allocation1 [shape = 'u32[144,128]{1,0:T(1,128)}', space=vmem, size = 0x12000, scoped, tag = 'internal scratch']
  #allocation2 [shape = 'f32[8,128]{1,0:T(8,128)}', space=vmem, size = 0x1000, scoped, tag = 'scratch operand']
  %s0 = inlined_call_operand.hbm [shape: bf16[256,1152], index: 0, kind: input, shape index: {}]
  %s1 = inlined_call_operand.hbm [shape: bf16[1152,128], index: 1, kind: input, shape index: {}]
  %s2 = inlined_call_operand.hbm [shape: bf16[128,128], index: 2, kind: input, shape index: {}]
  %s3 = inlined_call_operand.hbm [shape: bf16[128,128], index: 3, kind: input, shape index: {}]
  %s4 = inlined_call_operand.hbm [shape: bf16[128,128], index: 4, kind: input, shape index: {}]
  %s5 = inlined_call_operand.vmem [shape: f32[9,128], index: 5, kind: input, shape index: {}]
  %s6 = inlined_call_operand.hbm [shape: f32[4,128], index: 6, kind: output, shape index: {}]
  %s7 = sld [smem:[#allocation0]]
  $region54: #{tpu_custom_call.1} parent=0
    _
  %s9 = ssub.s32 1, %s7
  %s10 = scalar_select 0, %s9, %s7
  $region1: #{tpu_custom_call.1} parent=0
    #allocation3 [shape = 'u8[589824]{0}', space=vmem, size = 0x90000, scoped, tag = 'input window, operand 0, single buffered']
    #allocation4 [shape = 's32[1]{0}', space=sflag, size = 0x4, scoped, tag = 'scoped memory for tpu_custom_call.1']
    #allocation5 [shape = 's32[1]{0}', space=sflag, size = 0x4, scoped, tag = 'scoped memory for tpu_custom_call.1']
    #allocation6 [shape = 'u8[294912]{0}', space=vmem, size = 0x48000, scoped, tag = 'input window, operand 1, single buffered']
    #allocation7 [shape = 's32[1]{0}', space=sflag, size = 0x4, scoped, tag = 'scoped memory for tpu_custom_call.1']
    #allocation8 [shape = 'u8[32768]{0}', space=vmem, size = 0x8000, scoped, tag = 'input window, operand 2, single buffered']
    #allocation9 [shape = 'u8[32768]{0}', space=vmem, size = 0x8000, scoped, tag = 'input window, operand 3, single buffered']
    #allocation10 [shape = 's32[1]{0}', space=sflag, size = 0x4, scoped, tag = 'scoped memory for tpu_custom_call.1']
    #allocation11 [shape = 'u8[32768]{0}', space=vmem, size = 0x8000, scoped, tag = 'input window, operand 4, single buffered']
    #allocation12 [shape = 'u8[2048]{0}', space=vmem, size = 0x800, scoped, tag = 'output window, operand 0, single buffered']
    %11 = vsyncpa [#allocation4], 0
    %12 = vsyncpa [#allocation7], 0
    %13 = vsyncpa [#allocation10], 0
    %14 = vsyncpa [#allocation5], 0
    // Predicated region
    $region2: #{tpu_custom_call.1} parent=1 // pred_check
      _
    $region3: #{tpu_custom_call.1} parent=1 // pred_check_branch
      %16 = sbr.rel (0) target = $region5
    $region4: #{tpu_custom_call.1} parent=1 // pred_region
      %s18 = ssub.s32 18432, 18432
      %19 = vsyncadd [#allocation4], %s18
      %s20 = sshll.u32 [#allocation3], 4
      %s21 = int_to_ptr.vmem [resolvable:$true] %s20
      %26 = dma.hbm_to_vmem [thread:$0]  %s0, 18432, %s21, [#allocation4], 576, 576, 36
    $region5: #{tpu_custom_call.1} parent=1 // pred_fallthru
      _
    // Predicated region
    $region6: #{tpu_custom_call.1} parent=1 // pred_check
      _
    $region7: #{tpu_custom_call.1} parent=1 // pred_check_branch
      %28 = sbr.rel (0) target = $region9
    $region8: #{tpu_custom_call.1} parent=1 // pred_region
      %s30 = ssub.s32 9216, 9216
      %31 = vsyncadd [#allocation7], %s30
      %s32 = sshll.u32 [#allocation6], 4
      %s33 = int_to_ptr.vmem [resolvable:$true] %s32
      %38 = dma.hbm_to_vmem [thread:$0]  %s1, 9216, %s33, [#allocation7], 64, 64, 4
    $region9: #{tpu_custom_call.1} parent=1 // pred_fallthru
      _
    // Predicated region
    $region10: #{tpu_custom_call.1} parent=1 // pred_check
      _
    $region11: #{tpu_custom_call.1} parent=1 // pred_check_branch
      %40 = sbr.rel (0) target = $region13
    $region12: #{tpu_custom_call.1} parent=1 // pred_region
      %s42 = ssub.s32 1024, 1024
      %43 = vsyncadd [#allocation7], %s42
      %s44 = sshll.u32 [#allocation8], 4
      %s45 = int_to_ptr.vmem [resolvable:$true] %s44
      %50 = dma.hbm_to_vmem [thread:$0]  %s2, 1024, %s45, [#allocation7], 64, 64, 4
    $region13: #{tpu_custom_call.1} parent=1 // pred_fallthru
      _
    // Predicated region
    $region14: #{tpu_custom_call.1} parent=1 // pred_check
      _
    $region15: #{tpu_custom_call.1} parent=1 // pred_check_branch
      %52 = sbr.rel (0) target = $region17
    $region16: #{tpu_custom_call.1} parent=1 // pred_region
      %s54 = ssub.s32 1024, 1024
      %55 = vsyncadd [#allocation10], %s54
      %s56 = sshll.u32 [#allocation9], 4
      %s57 = int_to_ptr.vmem [resolvable:$true] %s56
      %62 = dma.hbm_to_vmem [thread:$0]  %s3, 1024, %s57, [#allocation10], 64, 64, 4
    $region17: #{tpu_custom_call.1} parent=1 // pred_fallthru
      _
    // Predicated region
    $region18: #{tpu_custom_call.1} parent=1 // pred_check
      _
    $region19: #{tpu_custom_call.1} parent=1 // pred_check_branch
      %64 = sbr.rel (0) target = $region21
    $region20: #{tpu_custom_call.1} parent=1 // pred_region
      %s66 = ssub.s32 1024, 1024
      %67 = vsyncadd [#allocation10], %s66
      %s68 = sshll.u32 [#allocation11], 4
      %s69 = int_to_ptr.vmem [resolvable:$true] %s68
      %74 = dma.hbm_to_vmem [thread:$0]  %s4, 1024, %s69, [#allocation10], 64, 64, 4
    $region21: #{tpu_custom_call.1} parent=1 // pred_fallthru
      _
    // Predicated region
    $region22: #{tpu_custom_call.1} parent=1 // pred_check
      _
    $region23: #{tpu_custom_call.1} parent=1 // pred_check_branch
      %76 = sbr.rel (0) target = $region25
    $region24: #{tpu_custom_call.1} parent=1 // pred_region
      _
    $region25: #{tpu_custom_call.1} parent=1 // pred_fallthru
      _
    // Predicated region
    $region26: #{tpu_custom_call.1} parent=1 // pred_check
      _
    $region27: #{tpu_custom_call.1} parent=1 // pred_check_branch
      %78 = sbr.rel (0) target = $region29
    $region28: #{tpu_custom_call.1} parent=1 // pred_region
      %79 = dma.done [#allocation4], 18432
    $region29: #{tpu_custom_call.1} parent=1 // pred_fallthru
      _
    // Predicated region
    $region30: #{tpu_custom_call.1} parent=1 // pred_check
      _
    $region31: #{tpu_custom_call.1} parent=1 // pred_check_branch
      %81 = sbr.rel (0) target = $region33
    $region32: #{tpu_custom_call.1} parent=1 // pred_region
      %82 = dma.done [#allocation7], 9216
    $region33: #{tpu_custom_call.1} parent=1 // pred_fallthru
      _
    // Predicated region
    $region34: #{tpu_custom_call.1} parent=1 // pred_check
      _
    $region35: #{tpu_custom_call.1} parent=1 // pred_check_branch
      %84 = sbr.rel (0) target = $region37
    $region36: #{tpu_custom_call.1} parent=1 // pred_region
      %85 = dma.done [#allocation7], 1024
    $region37: #{tpu_custom_call.1} parent=1 // pred_fallthru
      _
    // Predicated region
    $region38: #{tpu_custom_call.1} parent=1 // pred_check
      _
    $region39: #{tpu_custom_call.1} parent=1 // pred_check_branch
      %87 = sbr.rel (0) target = $region41
    $region40: #{tpu_custom_call.1} parent=1 // pred_region
      %88 = dma.done [#allocation10], 1024
    $region41: #{tpu_custom_call.1} parent=1 // pred_fallthru
      _
    // Predicated region
    $region42: #{tpu_custom_call.1} parent=1 // pred_check
      _
    $region43: #{tpu_custom_call.1} parent=1 // pred_check_branch
      %90 = sbr.rel (0) target = $region45
    $region44: #{tpu_custom_call.1} parent=1 // pred_region
      %91 = dma.done [#allocation10], 1024
    $region45: #{tpu_custom_call.1} parent=1 // pred_fallthru
      _
    %v93 = vld [vmem:[#allocation3] sm:$0xff]
    %v94 = vld [vmem:[#allocation3 + $0x8] sm:$0xff]
    %v95 = vld [vmem:[#allocation3 + $0x10] sm:$0xff]
    %v96 = vld [vmem:[#allocation3 + $0x18] sm:$0xff]
    %v97 = vld [vmem:[#allocation3 + $0x20] sm:$0xf]
    %v98 = vld [vmem:[#allocation3 + $0x24] sm:$0xff]
    %v99 = vld [vmem:[#allocation3 + $0x2c] sm:$0xff]
    %v100 = vld [vmem:[#allocation3 + $0x34] sm:$0xff]
    %v101 = vld [vmem:[#allocation3 + $0x3c] sm:$0xff]
    %v102 = vld [vmem:[#allocation3 + $0x44] sm:$0xf]
    %v103 = vld [vmem:[#allocation3 + $0x48] sm:$0xff]
    %v104 = vld [vmem:[#allocation3 + $0x50] sm:$0xff]
    %v105 = vld [vmem:[#allocation3 + $0x58] sm:$0xff]
    %v106 = vld [vmem:[#allocation3 + $0x60] sm:$0xff]
    %v107 = vld [vmem:[#allocation3 + $0x68] sm:$0xf]
    %v108 = vld [vmem:[#allocation3 + $0x6c] sm:$0xff]
    %v109 = vld [vmem:[#allocation3 + $0x74] sm:$0xff]
    %v110 = vld [vmem:[#allocation3 + $0x7c] sm:$0xff]
    %v111 = vld [vmem:[#allocation3 + $0x84] sm:$0xff]
    %v112 = vld [vmem:[#allocation3 + $0x8c] sm:$0xf]
    %v113 = vld [vmem:[#allocation3 + $0x90] sm:$0xff]
    %v114 = vld [vmem:[#allocation3 + $0x98] sm:$0xff]
    %v115 = vld [vmem:[#allocation3 + $0xa0] sm:$0xff]
    %v116 = vld [vmem:[#allocation3 + $0xa8] sm:$0xff]
    %v117 = vld [vmem:[#allocation3 + $0xb0] sm:$0xf]
    %v118 = vld [vmem:[#allocation3 + $0xb4] sm:$0xff]
    %v119 = vld [vmem:[#allocation3 + $0xbc] sm:$0xff]
    %v120 = vld [vmem:[#allocation3 + $0xc4] sm:$0xff]
    %v121 = vld [vmem:[#allocation3 + $0xcc] sm:$0xff]
    %v122 = vld [vmem:[#allocation3 + $0xd4] sm:$0xf]
    %v123 = vld [vmem:[#allocation3 + $0xd8] sm:$0xff]
    %v124 = vld [vmem:[#allocation3 + $0xe0] sm:$0xff]
    %v125 = vld [vmem:[#allocation3 + $0xe8] sm:$0xff]
    %v126 = vld [vmem:[#allocation3 + $0xf0] sm:$0xff]
    %v127 = vld [vmem:[#allocation3 + $0xf8] sm:$0xf]
    %v128 = vld [vmem:[#allocation3 + $0xfc] sm:$0xff]
    %v129 = vld [vmem:[#allocation3 + $0x104] sm:$0xff]
    %v130 = vld [vmem:[#allocation3 + $0x10c] sm:$0xff]
    %v131 = vld [vmem:[#allocation3 + $0x114] sm:$0xff]
    %v132 = vld [vmem:[#allocation3 + $0x11c] sm:$0xf]
    %v133 = vld [vmem:[#allocation3 + $0x120] sm:$0xff]
    %v134 = vld [vmem:[#allocation3 + $0x128] sm:$0xff]
    %v135 = vld [vmem:[#allocation3 + $0x130] sm:$0xff]
    %v136 = vld [vmem:[#allocation3 + $0x138] sm:$0xff]
    %v137 = vld [vmem:[#allocation3 + $0x140] sm:$0xf]
    %v138 = vld [vmem:[#allocation3 + $0x144] sm:$0xff]
    %v139 = vld [vmem:[#allocation3 + $0x14c] sm:$0xff]
    %v140 = vld [vmem:[#allocation3 + $0x154] sm:$0xff]
    %v141 = vld [vmem:[#allocation3 + $0x15c] sm:$0xff]
    %v142 = vld [vmem:[#allocation3 + $0x164] sm:$0xf]
    %v143 = vld [vmem:[#allocation3 + $0x168] sm:$0xff]
    %v144 = vld [vmem:[#allocation3 + $0x170] sm:$0xff]
    %v145 = vld [vmem:[#allocation3 + $0x178] sm:$0xff]
    %v146 = vld [vmem:[#allocation3 + $0x180] sm:$0xff]
    %v147 = vld [vmem:[#allocation3 + $0x188] sm:$0xf]
    %v148 = vld [vmem:[#allocation3 + $0x18c] sm:$0xff]
    %v149 = vld [vmem:[#allocation3 + $0x194] sm:$0xff]
    %v150 = vld [vmem:[#allocation3 + $0x19c] sm:$0xff]
    %v151 = vld [vmem:[#allocation3 + $0x1a4] sm:$0xff]
    %v152 = vld [vmem:[#allocation3 + $0x1ac] sm:$0xf]
    %v153 = vld [vmem:[#allocation3 + $0x1b0] sm:$0xff]
    %v154 = vld [vmem:[#allocation3 + $0x1b8] sm:$0xff]
    %v155 = vld [vmem:[#allocation3 + $0x1c0] sm:$0xff]
    %v156 = vld [vmem:[#allocation3 + $0x1c8] sm:$0xff]
    %v157 = vld [vmem:[#allocation3 + $0x1d0] sm:$0xf]
    %v158 = vld [vmem:[#allocation3 + $0x1d4] sm:$0xff]
    %v159 = vld [vmem:[#allocation3 + $0x1dc] sm:$0xff]
    %v160 = vld [vmem:[#allocation3 + $0x1e4] sm:$0xff]
    %v161 = vld [vmem:[#allocation3 + $0x1ec] sm:$0xff]
    %v162 = vld [vmem:[#allocation3 + $0x1f4] sm:$0xf]
    %v163 = vld [vmem:[#allocation3 + $0x1f8] sm:$0xff]
    %v164 = vld [vmem:[#allocation3 + $0x200] sm:$0xff]
    %v165 = vld [vmem:[#allocation3 + $0x208] sm:$0xff]
    %v166 = vld [vmem:[#allocation3 + $0x210] sm:$0xff]
    %v167 = vld [vmem:[#allocation3 + $0x218] sm:$0xf]
    %v168 = vld [vmem:[#allocation3 + $0x21c] sm:$0xff]
    %v169 = vld [vmem:[#allocation3 + $0x224] sm:$0xff]
    %v170 = vld [vmem:[#allocation3 + $0x22c] sm:$0xff]
    %v171 = vld [vmem:[#allocation3 + $0x234] sm:$0xff]
    %v172 = vld [vmem:[#allocation3 + $0x23c] sm:$0xf]
    %v173 = vld [vmem:[#allocation3 + $0x240] sm:$0xff]
    %v174 = vld [vmem:[#allocation3 + $0x248] sm:$0xff]
    %v175 = vld [vmem:[#allocation3 + $0x250] sm:$0xff]
    %v176 = vld [vmem:[#allocation3 + $0x258] sm:$0xff]
    %v177 = vld [vmem:[#allocation3 + $0x260] sm:$0xf]
    %v178 = vld [vmem:[#allocation3 + $0x264] sm:$0xff]
    %v179 = vld [vmem:[#allocation3 + $0x26c] sm:$0xff]
    %v180 = vld [vmem:[#allocation3 + $0x274] sm:$0xff]
    %v181 = vld [vmem:[#allocation3 + $0x27c] sm:$0xff]
    %v182 = vld [vmem:[#allocation3 + $0x284] sm:$0xf]
    %v183 = vld [vmem:[#allocation3 + $0x288] sm:$0xff]
    %v184 = vld [vmem:[#allocation3 + $0x290] sm:$0xff]
    %v185 = vld [vmem:[#allocation3 + $0x298] sm:$0xff]
    %v186 = vld [vmem:[#allocation3 + $0x2a0] sm:$0xff]
    %v187 = vld [vmem:[#allocation3 + $0x2a8] sm:$0xf]
    %v188 = vld [vmem:[#allocation3 + $0x2ac] sm:$0xff]
    %v189 = vld [vmem:[#allocation3 + $0x2b4] sm:$0xff]
    %v190 = vld [vmem:[#allocation3 + $0x2bc] sm:$0xff]
    %v191 = vld [vmem:[#allocation3 + $0x2c4] sm:$0xff]
    %v192 = vld [vmem:[#allocation3 + $0x2cc] sm:$0xf]
    %v193 = vld [vmem:[#allocation3 + $0x2d0] sm:$0xff]
    %v194 = vld [vmem:[#allocation3 + $0x2d8] sm:$0xff]
    %v195 = vld [vmem:[#allocation3 + $0x2e0] sm:$0xff]
    %v196 = vld [vmem:[#allocation3 + $0x2e8] sm:$0xff]
    %v197 = vld [vmem:[#allocation3 + $0x2f0] sm:$0xf]
    %v198 = vld [vmem:[#allocation3 + $0x2f4] sm:$0xff]
    %v199 = vld [vmem:[#allocation3 + $0x2fc] sm:$0xff]
    %v200 = vld [vmem:[#allocation3 + $0x304] sm:$0xff]
    %v201 = vld [vmem:[#allocation3 + $0x30c] sm:$0xff]
    %v202 = vld [vmem:[#allocation3 + $0x314] sm:$0xf]
    %v203 = vld [vmem:[#allocation3 + $0x318] sm:$0xff]
    %v204 = vld [vmem:[#allocation3 + $0x320] sm:$0xff]
    %v205 = vld [vmem:[#allocation3 + $0x328] sm:$0xff]
    %v206 = vld [vmem:[#allocation3 + $0x330] sm:$0xff]
    %v207 = vld [vmem:[#allocation3 + $0x338] sm:$0xf]
    %v208 = vld [vmem:[#allocation3 + $0x33c] sm:$0xff]
    %v209 = vld [vmem:[#allocation3 + $0x344] sm:$0xff]
    %v210 = vld [vmem:[#allocation3 + $0x34c] sm:$0xff]
    %v211 = vld [vmem:[#allocation3 + $0x354] sm:$0xff]
    %v212 = vld [vmem:[#allocation3 + $0x35c] sm:$0xf]
    %v213 = vld [vmem:[#allocation3 + $0x360] sm:$0xff]
    %v214 = vld [vmem:[#allocation3 + $0x368] sm:$0xff]
    %v215 = vld [vmem:[#allocation3 + $0x370] sm:$0xff]
    %v216 = vld [vmem:[#allocation3 + $0x378] sm:$0xff]
    %v217 = vld [vmem:[#allocation3 + $0x380] sm:$0xf]
    %v218 = vld [vmem:[#allocation3 + $0x384] sm:$0xff]
    %v219 = vld [vmem:[#allocation3 + $0x38c] sm:$0xff]
    %v220 = vld [vmem:[#allocation3 + $0x394] sm:$0xff]
    %v221 = vld [vmem:[#allocation3 + $0x39c] sm:$0xff]
    %v222 = vld [vmem:[#allocation3 + $0x3a4] sm:$0xf]
    %v223 = vld [vmem:[#allocation3 + $0x3a8] sm:$0xff]
    %v224 = vld [vmem:[#allocation3 + $0x3b0] sm:$0xff]
    %v225 = vld [vmem:[#allocation3 + $0x3b8] sm:$0xff]
    %v226 = vld [vmem:[#allocation3 + $0x3c0] sm:$0xff]
    %v227 = vld [vmem:[#allocation3 + $0x3c8] sm:$0xf]
    %v228 = vld [vmem:[#allocation3 + $0x3cc] sm:$0xff]
    %v229 = vld [vmem:[#allocation3 + $0x3d4] sm:$0xff]
    %v230 = vld [vmem:[#allocation3 + $0x3dc] sm:$0xff]
    %v231 = vld [vmem:[#allocation3 + $0x3e4] sm:$0xff]
    %v232 = vld [vmem:[#allocation3 + $0x3ec] sm:$0xf]
    %v233 = vld [vmem:[#allocation3 + $0x3f0] sm:$0xff]
    %v234 = vld [vmem:[#allocation3 + $0x3f8] sm:$0xff]
    %v235 = vld [vmem:[#allocation3 + $0x400] sm:$0xff]
    %v236 = vld [vmem:[#allocation3 + $0x408] sm:$0xff]
    %v237 = vld [vmem:[#allocation3 + $0x410] sm:$0xf]
    %v238 = vld [vmem:[#allocation3 + $0x414] sm:$0xff]
    %v239 = vld [vmem:[#allocation3 + $0x41c] sm:$0xff]
    %v240 = vld [vmem:[#allocation3 + $0x424] sm:$0xff]
    %v241 = vld [vmem:[#allocation3 + $0x42c] sm:$0xff]
    %v242 = vld [vmem:[#allocation3 + $0x434] sm:$0xf]
    %v243 = vld [vmem:[#allocation3 + $0x438] sm:$0xff]
    %v244 = vld [vmem:[#allocation3 + $0x440] sm:$0xff]
    %v245 = vld [vmem:[#allocation3 + $0x448] sm:$0xff]
    %v246 = vld [vmem:[#allocation3 + $0x450] sm:$0xff]
    %v247 = vld [vmem:[#allocation3 + $0x458] sm:$0xf]
    %v248 = vld [vmem:[#allocation3 + $0x45c] sm:$0xff]
    %v249 = vld [vmem:[#allocation3 + $0x464] sm:$0xff]
    %v250 = vld [vmem:[#allocation3 + $0x46c] sm:$0xff]
    %v251 = vld [vmem:[#allocation3 + $0x474] sm:$0xff]
    %v252 = vld [vmem:[#allocation3 + $0x47c] sm:$0xf]
    %v253 = vld [vmem:[#allocation6] sm:$0xf]
    %v254 = vld [vmem:[#allocation6 + $0x4] sm:$0xf]
    %v255 = vld [vmem:[#allocation6 + $0x8] sm:$0xf]
    %v256 = vld [vmem:[#allocation6 + $0xc] sm:$0xf]
    %v257 = vld [vmem:[#allocation6 + $0x10] sm:$0xf]
    %v258 = vld [vmem:[#allocation6 + $0x14] sm:$0xf]
    %v259 = vld [vmem:[#allocation6 + $0x18] sm:$0xf]
    %v260 = vld [vmem:[#allocation6 + $0x1c] sm:$0xf]
    %v261 = vld [vmem:[#allocation6 + $0x20] sm:$0xf]
    %v262 = vld [vmem:[#allocation6 + $0x24] sm:$0xf]
    %v263 = vld [vmem:[#allocation6 + $0x28] sm:$0xf]
    %v264 = vld [vmem:[#allocation6 + $0x2c] sm:$0xf]
    %v265 = vld [vmem:[#allocation6 + $0x30] sm:$0xf]
    %v266 = vld [vmem:[#allocation6 + $0x34] sm:$0xf]
    %v267 = vld [vmem:[#allocation6 + $0x38] sm:$0xf]
    %v268 = vld [vmem:[#allocation6 + $0x3c] sm:$0xf]
    %v269 = vld [vmem:[#allocation6 + $0x40] sm:$0xf]
    %v270 = vld [vmem:[#allocation6 + $0x44] sm:$0xf]
    %v271 = vld [vmem:[#allocation6 + $0x48] sm:$0xf]
    %v272 = vld [vmem:[#allocation6 + $0x4c] sm:$0xf]
    %v273 = vld [vmem:[#allocation6 + $0x50] sm:$0xf]
    %v274 = vld [vmem:[#allocation6 + $0x54] sm:$0xf]
    %v275 = vld [vmem:[#allocation6 + $0x58] sm:$0xf]
    %v276 = vld [vmem:[#allocation6 + $0x5c] sm:$0xf]
    %v277 = vld [vmem:[#allocation6 + $0x60] sm:$0xf]
    %v278 = vld [vmem:[#allocation6 + $0x64] sm:$0xf]
    %v279 = vld [vmem:[#allocation6 + $0x68] sm:$0xf]
    %v280 = vld [vmem:[#allocation6 + $0x6c] sm:$0xf]
    %v281 = vld [vmem:[#allocation6 + $0x70] sm:$0xf]
    %v282 = vld [vmem:[#allocation6 + $0x74] sm:$0xf]
    %v283 = vld [vmem:[#allocation6 + $0x78] sm:$0xf]
    %v284 = vld [vmem:[#allocation6 + $0x7c] sm:$0xf]
    %v285 = vld [vmem:[#allocation6 + $0x80] sm:$0xf]
    %v286 = vld [vmem:[#allocation6 + $0x84] sm:$0xf]
    %v287 = vld [vmem:[#allocation6 + $0x88] sm:$0xf]
    %v288 = vld [vmem:[#allocation6 + $0x8c] sm:$0xf]
    %v289 = vld [vmem:[#allocation6 + $0x90] sm:$0xf]
    %v290 = vld [vmem:[#allocation6 + $0x94] sm:$0xf]
    %v291 = vld [vmem:[#allocation6 + $0x98] sm:$0xf]
    %v292 = vld [vmem:[#allocation6 + $0x9c] sm:$0xf]
    %v293 = vld [vmem:[#allocation6 + $0xa0] sm:$0xf]
    %v294 = vld [vmem:[#allocation6 + $0xa4] sm:$0xf]
    %v295 = vld [vmem:[#allocation6 + $0xa8] sm:$0xf]
    %v296 = vld [vmem:[#allocation6 + $0xac] sm:$0xf]
    %v297 = vld [vmem:[#allocation6 + $0xb0] sm:$0xf]
    %v298 = vld [vmem:[#allocation6 + $0xb4] sm:$0xf]
    %v299 = vld [vmem:[#allocation6 + $0xb8] sm:$0xf]
    %v300 = vld [vmem:[#allocation6 + $0xbc] sm:$0xf]
    %v301 = vld [vmem:[#allocation6 + $0xc0] sm:$0xf]
    %v302 = vld [vmem:[#allocation6 + $0xc4] sm:$0xf]
    %v303 = vld [vmem:[#allocation6 + $0xc8] sm:$0xf]
    %v304 = vld [vmem:[#allocation6 + $0xcc] sm:$0xf]
    %v305 = vld [vmem:[#allocation6 + $0xd0] sm:$0xf]
    %v306 = vld [vmem:[#allocation6 + $0xd4] sm:$0xf]
    %v307 = vld [vmem:[#allocation6 + $0xd8] sm:$0xf]
    %v308 = vld [vmem:[#allocation6 + $0xdc] sm:$0xf]
    %v309 = vld [vmem:[#allocation6 + $0xe0] sm:$0xf]
    %v310 = vld [vmem:[#allocation6 + $0xe4] sm:$0xf]
    %v311 = vld [vmem:[#allocation6 + $0xe8] sm:$0xf]
    %v312 = vld [vmem:[#allocation6 + $0xec] sm:$0xf]
    %v313 = vld [vmem:[#allocation6 + $0xf0] sm:$0xf]
    %v314 = vld [vmem:[#allocation6 + $0xf4] sm:$0xf]
    %v315 = vld [vmem:[#allocation6 + $0xf8] sm:$0xf]
    %v316 = vld [vmem:[#allocation6 + $0xfc] sm:$0xf]
    %v317 = vld [vmem:[#allocation6 + $0x100] sm:$0xf]
    %v318 = vld [vmem:[#allocation6 + $0x104] sm:$0xf]
    %v319 = vld [vmem:[#allocation6 + $0x108] sm:$0xf]
    %v320 = vld [vmem:[#allocation6 + $0x10c] sm:$0xf]
    %v321 = vld [vmem:[#allocation6 + $0x110] sm:$0xf]
    %v322 = vld [vmem:[#allocation6 + $0x114] sm:$0xf]
    %v323 = vld [vmem:[#allocation6 + $0x118] sm:$0xf]
    %v324 = vld [vmem:[#allocation6 + $0x11c] sm:$0xf]
    %v325 = vld [vmem:[#allocation6 + $0x120] sm:$0xf]
    %v326 = vld [vmem:[#allocation6 + $0x124] sm:$0xf]
    %v327 = vld [vmem:[#allocation6 + $0x128] sm:$0xf]
    %v328 = vld [vmem:[#allocation6 + $0x12c] sm:$0xf]
    %v329 = vld [vmem:[#allocation6 + $0x130] sm:$0xf]
    %v330 = vld [vmem:[#allocation6 + $0x134] sm:$0xf]
    %v331 = vld [vmem:[#allocation6 + $0x138] sm:$0xf]
    %v332 = vld [vmem:[#allocation6 + $0x13c] sm:$0xf]
    %v333 = vld [vmem:[#allocation6 + $0x140] sm:$0xf]
    %v334 = vld [vmem:[#allocation6 + $0x144] sm:$0xf]
    %v335 = vld [vmem:[#allocation6 + $0x148] sm:$0xf]
    %v336 = vld [vmem:[#allocation6 + $0x14c] sm:$0xf]
    %v337 = vld [vmem:[#allocation6 + $0x150] sm:$0xf]
    %v338 = vld [vmem:[#allocation6 + $0x154] sm:$0xf]
    %v339 = vld [vmem:[#allocation6 + $0x158] sm:$0xf]
    %v340 = vld [vmem:[#allocation6 + $0x15c] sm:$0xf]
    %v341 = vld [vmem:[#allocation6 + $0x160] sm:$0xf]
    %v342 = vld [vmem:[#allocation6 + $0x164] sm:$0xf]
    %v343 = vld [vmem:[#allocation6 + $0x168] sm:$0xf]
    %v344 = vld [vmem:[#allocation6 + $0x16c] sm:$0xf]
    %v345 = vld [vmem:[#allocation6 + $0x170] sm:$0xf]
    %v346 = vld [vmem:[#allocation6 + $0x174] sm:$0xf]
    %v347 = vld [vmem:[#allocation6 + $0x178] sm:$0xf]
    %v348 = vld [vmem:[#allocation6 + $0x17c] sm:$0xf]
    %v349 = vld [vmem:[#allocation6 + $0x180] sm:$0xf]
    %v350 = vld [vmem:[#allocation6 + $0x184] sm:$0xf]
    %v351 = vld [vmem:[#allocation6 + $0x188] sm:$0xf]
    %v352 = vld [vmem:[#allocation6 + $0x18c] sm:$0xf]
    %v353 = vld [vmem:[#allocation6 + $0x190] sm:$0xf]
    %v354 = vld [vmem:[#allocation6 + $0x194] sm:$0xf]
    %v355 = vld [vmem:[#allocation6 + $0x198] sm:$0xf]
    %v356 = vld [vmem:[#allocation6 + $0x19c] sm:$0xf]
    %v357 = vld [vmem:[#allocation6 + $0x1a0] sm:$0xf]
    %v358 = vld [vmem:[#allocation6 + $0x1a4] sm:$0xf]
    %v359 = vld [vmem:[#allocation6 + $0x1a8] sm:$0xf]
    %v360 = vld [vmem:[#allocation6 + $0x1ac] sm:$0xf]
    %v361 = vld [vmem:[#allocation6 + $0x1b0] sm:$0xf]
    %v362 = vld [vmem:[#allocation6 + $0x1b4] sm:$0xf]
    %v363 = vld [vmem:[#allocation6 + $0x1b8] sm:$0xf]
    %v364 = vld [vmem:[#allocation6 + $0x1bc] sm:$0xf]
    %v365 = vld [vmem:[#allocation6 + $0x1c0] sm:$0xf]
    %v366 = vld [vmem:[#allocation6 + $0x1c4] sm:$0xf]
    %v367 = vld [vmem:[#allocation6 + $0x1c8] sm:$0xf]
    %v368 = vld [vmem:[#allocation6 + $0x1cc] sm:$0xf]
    %v369 = vld [vmem:[#allocation6 + $0x1d0] sm:$0xf]
    %v370 = vld [vmem:[#allocation6 + $0x1d4] sm:$0xf]
    %v371 = vld [vmem:[#allocation6 + $0x1d8] sm:$0xf]
    %v372 = vld [vmem:[#allocation6 + $0x1dc] sm:$0xf]
    %v373 = vld [vmem:[#allocation6 + $0x1e0] sm:$0xf]
    %v374 = vld [vmem:[#allocation6 + $0x1e4] sm:$0xf]
    %v375 = vld [vmem:[#allocation6 + $0x1e8] sm:$0xf]
    %v376 = vld [vmem:[#allocation6 + $0x1ec] sm:$0xf]
    %v377 = vld [vmem:[#allocation6 + $0x1f0] sm:$0xf]
    %v378 = vld [vmem:[#allocation6 + $0x1f4] sm:$0xf]
    %v379 = vld [vmem:[#allocation6 + $0x1f8] sm:$0xf]
    %v380 = vld [vmem:[#allocation6 + $0x1fc] sm:$0xf]
    %v381 = vld [vmem:[#allocation6 + $0x200] sm:$0xf]
    %v382 = vld [vmem:[#allocation6 + $0x204] sm:$0xf]
    %v383 = vld [vmem:[#allocation6 + $0x208] sm:$0xf]
    %v384 = vld [vmem:[#allocation6 + $0x20c] sm:$0xf]
    %v385 = vld [vmem:[#allocation6 + $0x210] sm:$0xf]
    %v386 = vld [vmem:[#allocation6 + $0x214] sm:$0xf]
    %v387 = vld [vmem:[#allocation6 + $0x218] sm:$0xf]
    %v388 = vld [vmem:[#allocation6 + $0x21c] sm:$0xf]
    %v389 = vld [vmem:[#allocation6 + $0x220] sm:$0xf]
    %v390 = vld [vmem:[#allocation6 + $0x224] sm:$0xf]
    %v391 = vld [vmem:[#allocation6 + $0x228] sm:$0xf]
    %v392 = vld [vmem:[#allocation6 + $0x22c] sm:$0xf]
    %v393 = vld [vmem:[#allocation6 + $0x230] sm:$0xf]
    %v394 = vld [vmem:[#allocation6 + $0x234] sm:$0xf]
    %v395 = vld [vmem:[#allocation6 + $0x238] sm:$0xf]
    %v396 = vld [vmem:[#allocation6 + $0x23c] sm:$0xf]
    %v557 = vunpack.c.l.b16 %v93
    %v558 = vunpack.c.h.b16 %v93
    %v559 = vunpack.c.l.b16 %v94
    %v560 = vunpack.c.h.b16 %v94
    %v561 = vunpack.c.l.b16 %v95
    %v562 = vunpack.c.h.b16 %v95
    %v563 = vunpack.c.l.b16 %v96
    %v564 = vunpack.c.h.b16 %v96
    %v565 = vunpack.c.l.b16 %v97
    %v566 = vunpack.c.l.b16 %v98
    %v567 = vunpack.c.h.b16 %v98
    %v568 = vunpack.c.l.b16 %v99
    %v569 = vunpack.c.h.b16 %v99
    %v570 = vunpack.c.l.b16 %v100
    %v571 = vunpack.c.h.b16 %v100
    %v572 = vunpack.c.l.b16 %v101
    %v573 = vunpack.c.h.b16 %v101
    %v574 = vunpack.c.l.b16 %v102
    %v575 = vunpack.c.l.b16 %v103
    %v576 = vunpack.c.h.b16 %v103
    %v577 = vunpack.c.l.b16 %v104
    %v578 = vunpack.c.h.b16 %v104
    %v579 = vunpack.c.l.b16 %v105
    %v580 = vunpack.c.h.b16 %v105
    %v581 = vunpack.c.l.b16 %v106
    %v582 = vunpack.c.h.b16 %v106
    %v583 = vunpack.c.l.b16 %v107
    %v584 = vunpack.c.l.b16 %v108
    %v585 = vunpack.c.h.b16 %v108
    %v586 = vunpack.c.l.b16 %v109
    %v587 = vunpack.c.h.b16 %v109
    %v588 = vunpack.c.l.b16 %v110
    %v589 = vunpack.c.h.b16 %v110
    %v590 = vunpack.c.l.b16 %v111
    %v591 = vunpack.c.h.b16 %v111
    %v592 = vunpack.c.l.b16 %v112
    %v593 = vunpack.c.l.b16 %v113
    %v594 = vunpack.c.h.b16 %v113
    %v595 = vunpack.c.l.b16 %v114
    %v596 = vunpack.c.h.b16 %v114
    %v597 = vunpack.c.l.b16 %v115
    %v598 = vunpack.c.h.b16 %v115
    %v599 = vunpack.c.l.b16 %v116
    %v600 = vunpack.c.h.b16 %v116
    %v601 = vunpack.c.l.b16 %v117
    %v602 = vunpack.c.l.b16 %v118
    %v603 = vunpack.c.h.b16 %v118
    %v604 = vunpack.c.l.b16 %v119
    %v605 = vunpack.c.h.b16 %v119
    %v606 = vunpack.c.l.b16 %v120
    %v607 = vunpack.c.h.b16 %v120
    %v608 = vunpack.c.l.b16 %v121
    %v609 = vunpack.c.h.b16 %v121
    %v610 = vunpack.c.l.b16 %v122
    %v611 = vunpack.c.l.b16 %v123
    %v612 = vunpack.c.h.b16 %v123
    %v613 = vunpack.c.l.b16 %v124
    %v614 = vunpack.c.h.b16 %v124
    %v615 = vunpack.c.l.b16 %v125
    %v616 = vunpack.c.h.b16 %v125
    %v617 = vunpack.c.l.b16 %v126
    %v618 = vunpack.c.h.b16 %v126
    %v619 = vunpack.c.l.b16 %v127
    %v620 = vunpack.c.l.b16 %v128
    %v621 = vunpack.c.h.b16 %v128
    %v622 = vunpack.c.l.b16 %v129
    %v623 = vunpack.c.h.b16 %v129
    %v624 = vunpack.c.l.b16 %v130
    %v625 = vunpack.c.h.b16 %v130
    %v626 = vunpack.c.l.b16 %v131
    %v627 = vunpack.c.h.b16 %v131
    %v628 = vunpack.c.l.b16 %v132
    %v629 = vunpack.c.l.b16 %v133
    %v630 = vunpack.c.h.b16 %v133
    %v631 = vunpack.c.l.b16 %v134
    %v632 = vunpack.c.h.b16 %v134
    %v633 = vunpack.c.l.b16 %v135
    %v634 = vunpack.c.h.b16 %v135
    %v635 = vunpack.c.l.b16 %v136
    %v636 = vunpack.c.h.b16 %v136
    %v637 = vunpack.c.l.b16 %v137
    %v638 = vunpack.c.l.b16 %v138
    %v639 = vunpack.c.h.b16 %v138
    %v640 = vunpack.c.l.b16 %v139
    %v641 = vunpack.c.h.b16 %v139
    %v642 = vunpack.c.l.b16 %v140
    %v643 = vunpack.c.h.b16 %v140
    %v644 = vunpack.c.l.b16 %v141
    %v645 = vunpack.c.h.b16 %v141
    %v646 = vunpack.c.l.b16 %v142
    %v647 = vunpack.c.l.b16 %v143
    %v648 = vunpack.c.h.b16 %v143
    %v649 = vunpack.c.l.b16 %v144
    %v650 = vunpack.c.h.b16 %v144
    %v651 = vunpack.c.l.b16 %v145
    %v652 = vunpack.c.h.b16 %v145
    %v653 = vunpack.c.l.b16 %v146
    %v654 = vunpack.c.h.b16 %v146
    %v655 = vunpack.c.l.b16 %v147
    %v656 = vunpack.c.l.b16 %v148
    %v657 = vunpack.c.h.b16 %v148
    %v658 = vunpack.c.l.b16 %v149
    %v659 = vunpack.c.h.b16 %v149
    %v660 = vunpack.c.l.b16 %v150
    %v661 = vunpack.c.h.b16 %v150
    %v662 = vunpack.c.l.b16 %v151
    %v663 = vunpack.c.h.b16 %v151
    %v664 = vunpack.c.l.b16 %v152
    %v665 = vunpack.c.l.b16 %v153
    %v666 = vunpack.c.h.b16 %v153
    %v667 = vunpack.c.l.b16 %v154
    %v668 = vunpack.c.h.b16 %v154
    %v669 = vunpack.c.l.b16 %v155
    %v670 = vunpack.c.h.b16 %v155
    %v671 = vunpack.c.l.b16 %v156
    %v672 = vunpack.c.h.b16 %v156
    %v673 = vunpack.c.l.b16 %v157
    %v674 = vunpack.c.l.b16 %v158
    %v675 = vunpack.c.h.b16 %v158
    %v676 = vunpack.c.l.b16 %v159
    %v677 = vunpack.c.h.b16 %v159
    %v678 = vunpack.c.l.b16 %v160
    %v679 = vunpack.c.h.b16 %v160
    %v680 = vunpack.c.l.b16 %v161
    %v681 = vunpack.c.h.b16 %v161
    %v682 = vunpack.c.l.b16 %v162
    %v683 = vunpack.c.l.b16 %v163
    %v684 = vunpack.c.h.b16 %v163
    %v685 = vunpack.c.l.b16 %v164
    %v686 = vunpack.c.h.b16 %v164
    %v687 = vunpack.c.l.b16 %v165
    %v688 = vunpack.c.h.b16 %v165
    %v689 = vunpack.c.l.b16 %v166
    %v690 = vunpack.c.h.b16 %v166
    %v691 = vunpack.c.l.b16 %v167
    %v692 = vunpack.c.l.b16 %v168
    %v693 = vunpack.c.h.b16 %v168
    %v694 = vunpack.c.l.b16 %v169
    %v695 = vunpack.c.h.b16 %v169
    %v696 = vunpack.c.l.b16 %v170
    %v697 = vunpack.c.h.b16 %v170
    %v698 = vunpack.c.l.b16 %v171
    %v699 = vunpack.c.h.b16 %v171
    %v700 = vunpack.c.l.b16 %v172
    %v701 = vunpack.c.l.b16 %v173
    %v702 = vunpack.c.h.b16 %v173
    %v703 = vunpack.c.l.b16 %v174
    %v704 = vunpack.c.h.b16 %v174
    %v705 = vunpack.c.l.b16 %v175
    %v706 = vunpack.c.h.b16 %v175
    %v707 = vunpack.c.l.b16 %v176
    %v708 = vunpack.c.h.b16 %v176
    %v709 = vunpack.c.l.b16 %v177
    %v710 = vunpack.c.l.b16 %v178
    %v711 = vunpack.c.h.b16 %v178
    %v712 = vunpack.c.l.b16 %v179
    %v713 = vunpack.c.h.b16 %v179
    %v714 = vunpack.c.l.b16 %v180
    %v715 = vunpack.c.h.b16 %v180
    %v716 = vunpack.c.l.b16 %v181
    %v717 = vunpack.c.h.b16 %v181
    %v718 = vunpack.c.l.b16 %v182
    %v719 = vunpack.c.l.b16 %v183
    %v720 = vunpack.c.h.b16 %v183
    %v721 = vunpack.c.l.b16 %v184
    %v722 = vunpack.c.h.b16 %v184
    %v723 = vunpack.c.l.b16 %v185
    %v724 = vunpack.c.h.b16 %v185
    %v725 = vunpack.c.l.b16 %v186
    %v726 = vunpack.c.h.b16 %v186
    %v727 = vunpack.c.l.b16 %v187
    %v728 = vunpack.c.l.b16 %v188
    %v729 = vunpack.c.h.b16 %v188
    %v730 = vunpack.c.l.b16 %v189
    %v731 = vunpack.c.h.b16 %v189
    %v732 = vunpack.c.l.b16 %v190
    %v733 = vunpack.c.h.b16 %v190
    %v734 = vunpack.c.l.b16 %v191
    %v735 = vunpack.c.h.b16 %v191
    %v736 = vunpack.c.l.b16 %v192
    %v737 = vunpack.c.l.b16 %v193
    %v738 = vunpack.c.h.b16 %v193
    %v739 = vunpack.c.l.b16 %v194
    %v740 = vunpack.c.h.b16 %v194
    %v741 = vunpack.c.l.b16 %v195
    %v742 = vunpack.c.h.b16 %v195
    %v743 = vunpack.c.l.b16 %v196
    %v744 = vunpack.c.h.b16 %v196
    %v745 = vunpack.c.l.b16 %v197
    %v746 = vunpack.c.l.b16 %v198
    %v747 = vunpack.c.h.b16 %v198
    %v748 = vunpack.c.l.b16 %v199
    %v749 = vunpack.c.h.b16 %v199
    %v750 = vunpack.c.l.b16 %v200
    %v751 = vunpack.c.h.b16 %v200
    %v752 = vunpack.c.l.b16 %v201
    %v753 = vunpack.c.h.b16 %v201
    %v754 = vunpack.c.l.b16 %v202
    %v755 = vunpack.c.l.b16 %v203
    %v756 = vunpack.c.h.b16 %v203
    %v757 = vunpack.c.l.b16 %v204
    %v758 = vunpack.c.h.b16 %v204
    %v759 = vunpack.c.l.b16 %v205
    %v760 = vunpack.c.h.b16 %v205
    %v761 = vunpack.c.l.b16 %v206
    %v762 = vunpack.c.h.b16 %v206
    %v763 = vunpack.c.l.b16 %v207
    %v764 = vunpack.c.l.b16 %v208
    %v765 = vunpack.c.h.b16 %v208
    %v766 = vunpack.c.l.b16 %v209
    %v767 = vunpack.c.h.b16 %v209
    %v768 = vunpack.c.l.b16 %v210
    %v769 = vunpack.c.h.b16 %v210
    %v770 = vunpack.c.l.b16 %v211
    %v771 = vunpack.c.h.b16 %v211
    %v772 = vunpack.c.l.b16 %v212
    %v773 = vunpack.c.l.b16 %v213
    %v774 = vunpack.c.h.b16 %v213
    %v775 = vunpack.c.l.b16 %v214
    %v776 = vunpack.c.h.b16 %v214
    %v777 = vunpack.c.l.b16 %v215
    %v778 = vunpack.c.h.b16 %v215
    %v779 = vunpack.c.l.b16 %v216
    %v780 = vunpack.c.h.b16 %v216
    %v781 = vunpack.c.l.b16 %v217
    %v782 = vunpack.c.l.b16 %v218
    %v783 = vunpack.c.h.b16 %v218
    %v784 = vunpack.c.l.b16 %v219
    %v785 = vunpack.c.h.b16 %v219
    %v786 = vunpack.c.l.b16 %v220
    %v787 = vunpack.c.h.b16 %v220
    %v788 = vunpack.c.l.b16 %v221
    %v789 = vunpack.c.h.b16 %v221
    %v790 = vunpack.c.l.b16 %v222
    %v791 = vunpack.c.l.b16 %v223
    %v792 = vunpack.c.h.b16 %v223
    %v793 = vunpack.c.l.b16 %v224
    %v794 = vunpack.c.h.b16 %v224
    %v795 = vunpack.c.l.b16 %v225
    %v796 = vunpack.c.h.b16 %v225
    %v797 = vunpack.c.l.b16 %v226
    %v798 = vunpack.c.h.b16 %v226
    %v799 = vunpack.c.l.b16 %v227
    %v800 = vunpack.c.l.b16 %v228
    %v801 = vunpack.c.h.b16 %v228
    %v802 = vunpack.c.l.b16 %v229
    %v803 = vunpack.c.h.b16 %v229
    %v804 = vunpack.c.l.b16 %v230
    %v805 = vunpack.c.h.b16 %v230
    %v806 = vunpack.c.l.b16 %v231
    %v807 = vunpack.c.h.b16 %v231
    %v808 = vunpack.c.l.b16 %v232
    %v809 = vunpack.c.l.b16 %v233
    %v810 = vunpack.c.h.b16 %v233
    %v811 = vunpack.c.l.b16 %v234
    %v812 = vunpack.c.h.b16 %v234
    %v813 = vunpack.c.l.b16 %v235
    %v814 = vunpack.c.h.b16 %v235
    %v815 = vunpack.c.l.b16 %v236
    %v816 = vunpack.c.h.b16 %v236
    %v817 = vunpack.c.l.b16 %v237
    %v818 = vunpack.c.l.b16 %v238
    %v819 = vunpack.c.h.b16 %v238
    %v820 = vunpack.c.l.b16 %v239
    %v821 = vunpack.c.h.b16 %v239
    %v822 = vunpack.c.l.b16 %v240
    %v823 = vunpack.c.h.b16 %v240
    %v824 = vunpack.c.l.b16 %v241
    %v825 = vunpack.c.h.b16 %v241
    %v826 = vunpack.c.l.b16 %v242
    %v827 = vunpack.c.l.b16 %v243
    %v828 = vunpack.c.h.b16 %v243
    %v829 = vunpack.c.l.b16 %v244
    %v830 = vunpack.c.h.b16 %v244
    %v831 = vunpack.c.l.b16 %v245
    %v832 = vunpack.c.h.b16 %v245
    %v833 = vunpack.c.l.b16 %v246
    %v834 = vunpack.c.h.b16 %v246
    %v835 = vunpack.c.l.b16 %v247
    %v836 = vunpack.c.l.b16 %v248
    %v837 = vunpack.c.h.b16 %v248
    %v838 = vunpack.c.l.b16 %v249
    %v839 = vunpack.c.h.b16 %v249
    %v840 = vunpack.c.l.b16 %v250
    %v841 = vunpack.c.h.b16 %v250
    %v842 = vunpack.c.l.b16 %v251
    %v843 = vunpack.c.h.b16 %v251
    %v844 = vunpack.c.l.b16 %v252
    %v845 = vpack.c.b16 %v566, %v557
    %v846 = vpack.c.b16 %v567, %v558
    %v847 = vpack.c.b16 %v568, %v559
    %v848 = vpack.c.b16 %v569, %v560
    %v849 = vpack.c.b16 %v570, %v561
    %v850 = vpack.c.b16 %v571, %v562
    %v851 = vpack.c.b16 %v572, %v563
    %v852 = vpack.c.b16 %v573, %v564
    %v853 = vpack.c.b16 %v574, %v565
    %v854 = vpack.c.b16 %v584, %v575
    %v855 = vpack.c.b16 %v585, %v576
    %v856 = vpack.c.b16 %v586, %v577
    %v857 = vpack.c.b16 %v587, %v578
    %v858 = vpack.c.b16 %v588, %v579
    %v859 = vpack.c.b16 %v589, %v580
    %v860 = vpack.c.b16 %v590, %v581
    %v861 = vpack.c.b16 %v591, %v582
    %v862 = vpack.c.b16 %v592, %v583
    %v863 = vpack.c.b16 %v602, %v593
    %v864 = vpack.c.b16 %v603, %v594
    %v865 = vpack.c.b16 %v604, %v595
    %v866 = vpack.c.b16 %v605, %v596
    %v867 = vpack.c.b16 %v606, %v597
    %v868 = vpack.c.b16 %v607, %v598
    %v869 = vpack.c.b16 %v608, %v599
    %v870 = vpack.c.b16 %v609, %v600
    %v871 = vpack.c.b16 %v610, %v601
    %v872 = vpack.c.b16 %v620, %v611
    %v873 = vpack.c.b16 %v621, %v612
    %v874 = vpack.c.b16 %v622, %v613
    %v875 = vpack.c.b16 %v623, %v614
    %v876 = vpack.c.b16 %v624, %v615
    %v877 = vpack.c.b16 %v625, %v616
    %v878 = vpack.c.b16 %v626, %v617
    %v879 = vpack.c.b16 %v627, %v618
    %v880 = vpack.c.b16 %v628, %v619
    %v881 = vpack.c.b16 %v638, %v629
    %v882 = vpack.c.b16 %v639, %v630
    %v883 = vpack.c.b16 %v640, %v631
    %v884 = vpack.c.b16 %v641, %v632
    %v885 = vpack.c.b16 %v642, %v633
    %v886 = vpack.c.b16 %v643, %v634
    %v887 = vpack.c.b16 %v644, %v635
    %v888 = vpack.c.b16 %v645, %v636
    %v889 = vpack.c.b16 %v646, %v637
    %v890 = vpack.c.b16 %v656, %v647
    %v891 = vpack.c.b16 %v657, %v648
    %v892 = vpack.c.b16 %v658, %v649
    %v893 = vpack.c.b16 %v659, %v650
    %v894 = vpack.c.b16 %v660, %v651
    %v895 = vpack.c.b16 %v661, %v652
    %v896 = vpack.c.b16 %v662, %v653
    %v897 = vpack.c.b16 %v663, %v654
    %v898 = vpack.c.b16 %v664, %v655
    %v899 = vpack.c.b16 %v674, %v665
    %v900 = vpack.c.b16 %v675, %v666
    %v901 = vpack.c.b16 %v676, %v667
    %v902 = vpack.c.b16 %v677, %v668
    %v903 = vpack.c.b16 %v678, %v669
    %v904 = vpack.c.b16 %v679, %v670
    %v905 = vpack.c.b16 %v680, %v671
    %v906 = vpack.c.b16 %v681, %v672
    %v907 = vpack.c.b16 %v682, %v673
    %v908 = vpack.c.b16 %v692, %v683
    %v909 = vpack.c.b16 %v693, %v684
    %v910 = vpack.c.b16 %v694, %v685
    %v911 = vpack.c.b16 %v695, %v686
    %v912 = vpack.c.b16 %v696, %v687
    %v913 = vpack.c.b16 %v697, %v688
    %v914 = vpack.c.b16 %v698, %v689
    %v915 = vpack.c.b16 %v699, %v690
    %v916 = vpack.c.b16 %v700, %v691
    %v917 = vpack.c.b16 %v710, %v701
    %v918 = vpack.c.b16 %v711, %v702
    %v919 = vpack.c.b16 %v712, %v703
    %v920 = vpack.c.b16 %v713, %v704
    %v921 = vpack.c.b16 %v714, %v705
    %v922 = vpack.c.b16 %v715, %v706
    %v923 = vpack.c.b16 %v716, %v707
    %v924 = vpack.c.b16 %v717, %v708
    %v925 = vpack.c.b16 %v718, %v709
    %v926 = vpack.c.b16 %v728, %v719
    %v927 = vpack.c.b16 %v729, %v720
    %v928 = vpack.c.b16 %v730, %v721
    %v929 = vpack.c.b16 %v731, %v722
    %v930 = vpack.c.b16 %v732, %v723
    %v931 = vpack.c.b16 %v733, %v724
    %v932 = vpack.c.b16 %v734, %v725
    %v933 = vpack.c.b16 %v735, %v726
    %v934 = vpack.c.b16 %v736, %v727
    %v935 = vpack.c.b16 %v746, %v737
    %v936 = vpack.c.b16 %v747, %v738
    %v937 = vpack.c.b16 %v748, %v739
    %v938 = vpack.c.b16 %v749, %v740
    %v939 = vpack.c.b16 %v750, %v741
    %v940 = vpack.c.b16 %v751, %v742
    %v941 = vpack.c.b16 %v752, %v743
    %v942 = vpack.c.b16 %v753, %v744
    %v943 = vpack.c.b16 %v754, %v745
    %v944 = vpack.c.b16 %v764, %v755
    %v945 = vpack.c.b16 %v765, %v756
    %v946 = vpack.c.b16 %v766, %v757
    %v947 = vpack.c.b16 %v767, %v758
    %v948 = vpack.c.b16 %v768, %v759
    %v949 = vpack.c.b16 %v769, %v760
    %v950 = vpack.c.b16 %v770, %v761
    %v951 = vpack.c.b16 %v771, %v762
    %v952 = vpack.c.b16 %v772, %v763
    %v953 = vpack.c.b16 %v782, %v773
    %v954 = vpack.c.b16 %v783, %v774
    %v955 = vpack.c.b16 %v784, %v775
    %v956 = vpack.c.b16 %v785, %v776
    %v957 = vpack.c.b16 %v786, %v777
    %v958 = vpack.c.b16 %v787, %v778
    %v959 = vpack.c.b16 %v788, %v779
    %v960 = vpack.c.b16 %v789, %v780
    %v961 = vpack.c.b16 %v790, %v781
    %v962 = vpack.c.b16 %v800, %v791
    %v963 = vpack.c.b16 %v801, %v792
    %v964 = vpack.c.b16 %v802, %v793
    %v965 = vpack.c.b16 %v803, %v794
    %v966 = vpack.c.b16 %v804, %v795
    %v967 = vpack.c.b16 %v805, %v796
    %v968 = vpack.c.b16 %v806, %v797
    %v969 = vpack.c.b16 %v807, %v798
    %v970 = vpack.c.b16 %v808, %v799
    %v971 = vpack.c.b16 %v818, %v809
    %v972 = vpack.c.b16 %v819, %v810
    %v973 = vpack.c.b16 %v820, %v811
    %v974 = vpack.c.b16 %v821, %v812
    %v975 = vpack.c.b16 %v822, %v813
    %v976 = vpack.c.b16 %v823, %v814
    %v977 = vpack.c.b16 %v824, %v815
    %v978 = vpack.c.b16 %v825, %v816
    %v979 = vpack.c.b16 %v826, %v817
    %v980 = vpack.c.b16 %v836, %v827
    %v981 = vpack.c.b16 %v837, %v828
    %v982 = vpack.c.b16 %v838, %v829
    %v983 = vpack.c.b16 %v839, %v830
    %v984 = vpack.c.b16 %v840, %v831
    %v985 = vpack.c.b16 %v841, %v832
    %v986 = vpack.c.b16 %v842, %v833
    %v987 = vpack.c.b16 %v843, %v834
    %v988 = vpack.c.b16 %v844, %v835
    %v1277 = vunpack.c.l.b16 %v253
    %v1278 = vunpack.c.l.b16 %v254
    %v1279 = vunpack.c.l.b16 %v255
    %v1280 = vunpack.c.l.b16 %v256
    %v1281 = vunpack.c.l.b16 %v257
    %v1282 = vunpack.c.l.b16 %v258
    %v1283 = vunpack.c.l.b16 %v259
    %v1284 = vunpack.c.l.b16 %v260
    %v1285 = vunpack.c.l.b16 %v261
    %v1286 = vunpack.c.l.b16 %v262
    %v1287 = vunpack.c.l.b16 %v263
    %v1288 = vunpack.c.l.b16 %v264
    %v1289 = vunpack.c.l.b16 %v265
    %v1290 = vunpack.c.l.b16 %v266
    %v1291 = vunpack.c.l.b16 %v267
    %v1292 = vunpack.c.l.b16 %v268
    %v1293 = vunpack.c.l.b16 %v269
    %v1294 = vunpack.c.l.b16 %v270
    %v1295 = vunpack.c.l.b16 %v271
    %v1296 = vunpack.c.l.b16 %v272
    %v1297 = vunpack.c.l.b16 %v273
    %v1298 = vunpack.c.l.b16 %v274
    %v1299 = vunpack.c.l.b16 %v275
    %v1300 = vunpack.c.l.b16 %v276
    %v1301 = vunpack.c.l.b16 %v277
    %v1302 = vunpack.c.l.b16 %v278
    %v1303 = vunpack.c.l.b16 %v279
    %v1304 = vunpack.c.l.b16 %v280
    %v1305 = vunpack.c.l.b16 %v281
    %v1306 = vunpack.c.l.b16 %v282
    %v1307 = vunpack.c.l.b16 %v283
    %v1308 = vunpack.c.l.b16 %v284
    %v1309 = vunpack.c.l.b16 %v285
    %v1310 = vunpack.c.l.b16 %v286
    %v1311 = vunpack.c.l.b16 %v287
    %v1312 = vunpack.c.l.b16 %v288
    %v1313 = vunpack.c.l.b16 %v289
    %v1314 = vunpack.c.l.b16 %v290
    %v1315 = vunpack.c.l.b16 %v291
    %v1316 = vunpack.c.l.b16 %v292
    %v1317 = vunpack.c.l.b16 %v293
    %v1318 = vunpack.c.l.b16 %v294
    %v1319 = vunpack.c.l.b16 %v295
    %v1320 = vunpack.c.l.b16 %v296
    %v1321 = vunpack.c.l.b16 %v297
    %v1322 = vunpack.c.l.b16 %v298
    %v1323 = vunpack.c.l.b16 %v299
    %v1324 = vunpack.c.l.b16 %v300
    %v1325 = vunpack.c.l.b16 %v301
    %v1326 = vunpack.c.l.b16 %v302
    %v1327 = vunpack.c.l.b16 %v303
    %v1328 = vunpack.c.l.b16 %v304
    %v1329 = vunpack.c.l.b16 %v305
    %v1330 = vunpack.c.l.b16 %v306
    %v1331 = vunpack.c.l.b16 %v307
    %v1332 = vunpack.c.l.b16 %v308
    %v1333 = vunpack.c.l.b16 %v309
    %v1334 = vunpack.c.l.b16 %v310
    %v1335 = vunpack.c.l.b16 %v311
    %v1336 = vunpack.c.l.b16 %v312
    %v1337 = vunpack.c.l.b16 %v313
    %v1338 = vunpack.c.l.b16 %v314
    %v1339 = vunpack.c.l.b16 %v315
    %v1340 = vunpack.c.l.b16 %v316
    %v1341 = vunpack.c.l.b16 %v317
    %v1342 = vunpack.c.l.b16 %v318
    %v1343 = vunpack.c.l.b16 %v319
    %v1344 = vunpack.c.l.b16 %v320
    %v1345 = vunpack.c.l.b16 %v321
    %v1346 = vunpack.c.l.b16 %v322
    %v1347 = vunpack.c.l.b16 %v323
    %v1348 = vunpack.c.l.b16 %v324
    %v1349 = vunpack.c.l.b16 %v325
    %v1350 = vunpack.c.l.b16 %v326
    %v1351 = vunpack.c.l.b16 %v327
    %v1352 = vunpack.c.l.b16 %v328
    %v1353 = vunpack.c.l.b16 %v329
    %v1354 = vunpack.c.l.b16 %v330
    %v1355 = vunpack.c.l.b16 %v331
    %v1356 = vunpack.c.l.b16 %v332
    %v1357 = vunpack.c.l.b16 %v333
    %v1358 = vunpack.c.l.b16 %v334
    %v1359 = vunpack.c.l.b16 %v335
    %v1360 = vunpack.c.l.b16 %v336
    %v1361 = vunpack.c.l.b16 %v337
    %v1362 = vunpack.c.l.b16 %v338
    %v1363 = vunpack.c.l.b16 %v339
    %v1364 = vunpack.c.l.b16 %v340
    %v1365 = vunpack.c.l.b16 %v341
    %v1366 = vunpack.c.l.b16 %v342
    %v1367 = vunpack.c.l.b16 %v343
    %v1368 = vunpack.c.l.b16 %v344
    %v1369 = vunpack.c.l.b16 %v345
    %v1370 = vunpack.c.l.b16 %v346
    %v1371 = vunpack.c.l.b16 %v347
    %v1372 = vunpack.c.l.b16 %v348
    %v1373 = vunpack.c.l.b16 %v349
    %v1374 = vunpack.c.l.b16 %v350
    %v1375 = vunpack.c.l.b16 %v351
    %v1376 = vunpack.c.l.b16 %v352
    %v1377 = vunpack.c.l.b16 %v353
    %v1378 = vunpack.c.l.b16 %v354
    %v1379 = vunpack.c.l.b16 %v355
    %v1380 = vunpack.c.l.b16 %v356
    %v1381 = vunpack.c.l.b16 %v357
    %v1382 = vunpack.c.l.b16 %v358
    %v1383 = vunpack.c.l.b16 %v359
    %v1384 = vunpack.c.l.b16 %v360
    %v1385 = vunpack.c.l.b16 %v361
    %v1386 = vunpack.c.l.b16 %v362
    %v1387 = vunpack.c.l.b16 %v363
    %v1388 = vunpack.c.l.b16 %v364
    %v1389 = vunpack.c.l.b16 %v365
    %v1390 = vunpack.c.l.b16 %v366
    %v1391 = vunpack.c.l.b16 %v367
    %v1392 = vunpack.c.l.b16 %v368
    %v1393 = vunpack.c.l.b16 %v369
    %v1394 = vunpack.c.l.b16 %v370
    %v1395 = vunpack.c.l.b16 %v371
    %v1396 = vunpack.c.l.b16 %v372
    %v1397 = vunpack.c.l.b16 %v373
    %v1398 = vunpack.c.l.b16 %v374
    %v1399 = vunpack.c.l.b16 %v375
    %v1400 = vunpack.c.l.b16 %v376
    %v1401 = vunpack.c.l.b16 %v377
    %v1402 = vunpack.c.l.b16 %v378
    %v1403 = vunpack.c.l.b16 %v379
    %v1404 = vunpack.c.l.b16 %v380
    %v1405 = vunpack.c.l.b16 %v381
    %v1406 = vunpack.c.l.b16 %v382
    %v1407 = vunpack.c.l.b16 %v383
    %v1408 = vunpack.c.l.b16 %v384
    %v1409 = vunpack.c.l.b16 %v385
    %v1410 = vunpack.c.l.b16 %v386
    %v1411 = vunpack.c.l.b16 %v387
    %v1412 = vunpack.c.l.b16 %v388
    %v1413 = vunpack.c.l.b16 %v389
    %v1414 = vunpack.c.l.b16 %v390
    %v1415 = vunpack.c.l.b16 %v391
    %v1416 = vunpack.c.l.b16 %v392
    %v1417 = vunpack.c.l.b16 %v393
    %v1418 = vunpack.c.l.b16 %v394
    %v1419 = vunpack.c.l.b16 %v395
    %v1420 = vunpack.c.l.b16 %v396
    %v1421 = vpack.c.b16 %v1278, %v1277
    %v1422 = vpack.c.b16 %v1280, %v1279
    %v1423 = vpack.c.b16 %v1282, %v1281
    %v1424 = vpack.c.b16 %v1284, %v1283
    %v1425 = vpack.c.b16 %v1286, %v1285
    %v1426 = vpack.c.b16 %v1288, %v1287
    %v1427 = vpack.c.b16 %v1290, %v1289
    %v1428 = vpack.c.b16 %v1292, %v1291
    %v1429 = vpack.c.b16 %v1294, %v1293
    %v1430 = vpack.c.b16 %v1296, %v1295
    %v1431 = vpack.c.b16 %v1298, %v1297
    %v1432 = vpack.c.b16 %v1300, %v1299
    %v1433 = vpack.c.b16 %v1302, %v1301
    %v1434 = vpack.c.b16 %v1304, %v1303
    %v1435 = vpack.c.b16 %v1306, %v1305
    %v1436 = vpack.c.b16 %v1308, %v1307
    %v1437 = vpack.c.b16 %v1310, %v1309
    %v1438 = vpack.c.b16 %v1312, %v1311
    %v1439 = vpack.c.b16 %v1314, %v1313
    %v1440 = vpack.c.b16 %v1316, %v1315
    %v1441 = vpack.c.b16 %v1318, %v1317
    %v1442 = vpack.c.b16 %v1320, %v1319
    %v1443 = vpack.c.b16 %v1322, %v1321
    %v1444 = vpack.c.b16 %v1324, %v1323
    %v1445 = vpack.c.b16 %v1326, %v1325
    %v1446 = vpack.c.b16 %v1328, %v1327
    %v1447 = vpack.c.b16 %v1330, %v1329
    %v1448 = vpack.c.b16 %v1332, %v1331
    %v1449 = vpack.c.b16 %v1334, %v1333
    %v1450 = vpack.c.b16 %v1336, %v1335
    %v1451 = vpack.c.b16 %v1338, %v1337
    %v1452 = vpack.c.b16 %v1340, %v1339
    %v1453 = vpack.c.b16 %v1342, %v1341
    %v1454 = vpack.c.b16 %v1344, %v1343
    %v1455 = vpack.c.b16 %v1346, %v1345
    %v1456 = vpack.c.b16 %v1348, %v1347
    %v1457 = vpack.c.b16 %v1350, %v1349
    %v1458 = vpack.c.b16 %v1352, %v1351
    %v1459 = vpack.c.b16 %v1354, %v1353
    %v1460 = vpack.c.b16 %v1356, %v1355
    %v1461 = vpack.c.b16 %v1358, %v1357
    %v1462 = vpack.c.b16 %v1360, %v1359
    %v1463 = vpack.c.b16 %v1362, %v1361
    %v1464 = vpack.c.b16 %v1364, %v1363
    %v1465 = vpack.c.b16 %v1366, %v1365
    %v1466 = vpack.c.b16 %v1368, %v1367
    %v1467 = vpack.c.b16 %v1370, %v1369
    %v1468 = vpack.c.b16 %v1372, %v1371
    %v1469 = vpack.c.b16 %v1374, %v1373
    %v1470 = vpack.c.b16 %v1376, %v1375
    %v1471 = vpack.c.b16 %v1378, %v1377
    %v1472 = vpack.c.b16 %v1380, %v1379
    %v1473 = vpack.c.b16 %v1382, %v1381
    %v1474 = vpack.c.b16 %v1384, %v1383
    %v1475 = vpack.c.b16 %v1386, %v1385
    %v1476 = vpack.c.b16 %v1388, %v1387
    %v1477 = vpack.c.b16 %v1390, %v1389
    %v1478 = vpack.c.b16 %v1392, %v1391
    %v1479 = vpack.c.b16 %v1394, %v1393
    %v1480 = vpack.c.b16 %v1396, %v1395
    %v1481 = vpack.c.b16 %v1398, %v1397
    %v1482 = vpack.c.b16 %v1400, %v1399
    %v1483 = vpack.c.b16 %v1402, %v1401
    %v1484 = vpack.c.b16 %v1404, %v1403
    %v1485 = vpack.c.b16 %v1406, %v1405
    %v1486 = vpack.c.b16 %v1408, %v1407
    %v1487 = vpack.c.b16 %v1410, %v1409
    %v1488 = vpack.c.b16 %v1412, %v1411
    %v1489 = vpack.c.b16 %v1414, %v1413
    %v1490 = vpack.c.b16 %v1416, %v1415
    %v1491 = vpack.c.b16 %v1418, %v1417
    %v1492 = vpack.c.b16 %v1420, %v1419
    %1565 = vmatprep.subr.bf16.mxu0 0
    %1566 = vmatpush1.bf16.msra.mxu0 %v1421
    %1567 = vmatprep.subr.bf16.mxu0 0
    %1568 = vmatpush1.bf16.msra.mxu0 %v1422
    %1569 = vmatprep.subr.bf16.mxu0 0
    %1570 = vmatpush1.bf16.msra.mxu0 %v1423
    %1571 = vmatprep.subr.bf16.mxu0 0
    %1572 = vmatpush1.bf16.msra.mxu0 %v1424
    %1573 = vmatprep.subr.bf16.mxu0 0
    %1574 = vmatpush1.bf16.msra.mxu0 %v1425
    %1575 = vmatprep.subr.bf16.mxu0 0
    %1576 = vmatpush1.bf16.msra.mxu0 %v1426
    %1577 = vmatprep.subr.bf16.mxu0 0
    %1578 = vmatpush1.bf16.msra.mxu0 %v1427
    %1579 = vmatprep.subr.bf16.mxu0 0
    %1580 = vmatpush1.bf16.msra.mxu0 %v1428
    %1581 = vmatprep.subr.bf16.mxu0 0
    %1582 = vmatpush1.bf16.msra.mxu0 %v1429
    %1583 = vmatprep.subr.bf16.mxu0 0
    %1584 = vmatpush1.bf16.msra.mxu0 %v1430
    %1585 = vmatprep.subr.bf16.mxu0 0
    %1586 = vmatpush1.bf16.msra.mxu0 %v1431
    %1587 = vmatprep.subr.bf16.mxu0 0
    %1588 = vmatpush1.bf16.msra.mxu0 %v1432
    %1589 = vmatprep.subr.bf16.mxu0 0
    %1590 = vmatpush1.bf16.msra.mxu0 %v1433
    %1591 = vmatprep.subr.bf16.mxu0 0
    %1592 = vmatpush1.bf16.msra.mxu0 %v1434
    %1593 = vmatprep.subr.bf16.mxu0 0
    %1594 = vmatpush1.bf16.msra.mxu0 %v1435
    %1595 = vmatprep.subr.bf16.mxu0 0
    %1596 = vmatpush1.bf16.msra.mxu0 %v1436
    %1597 = vmatprep.mubr.bf16.mxu0 %v846
    %1598 = vmatmul.mubr.bf16.gmra.mrb[0].mxu0 %v845
    %v1599 = vpop.f32.mrb[0].mxu0
    %v1600 = vadd.f32 0.0, %v1599
    %v1601 = vpop.f32.mrb[0].mxu0
    %v1602 = vpop.f32.mrb[0].mxu0
    %v1603 = vadd.f32 0.0, %v1602
    %v1604 = vpop.f32.mrb[0].mxu0
    %1605 = vmatprep.mubr.bf16.mxu0 %v855
    %1606 = vmatmul.mubr.bf16.gmra.mrb[0].mxu0 %v854
    %v1607 = vpop.f32.mrb[0].mxu0
    %v1608 = vadd.f32 0.0, %v1607
    %v1609 = vpop.f32.mrb[0].mxu0
    %v1610 = vpop.f32.mrb[0].mxu0
    %v1611 = vadd.f32 0.0, %v1610
    %v1612 = vpop.f32.mrb[0].mxu0
    %1613 = vmatprep.mubr.bf16.mxu0 %v864
    %1614 = vmatmul.mubr.bf16.gmra.mrb[0].mxu0 %v863
    %v1615 = vpop.f32.mrb[0].mxu0
    %v1616 = vadd.f32 0.0, %v1615
    %v1617 = vpop.f32.mrb[0].mxu0
    %v1618 = vpop.f32.mrb[0].mxu0
    %v1619 = vadd.f32 0.0, %v1618
    %v1620 = vpop.f32.mrb[0].mxu0
    %1621 = vmatprep.mubr.bf16.mxu0 %v873
    %1622 = vmatmul.mubr.bf16.gmra.mrb[0].mxu0 %v872
    %v1623 = vpop.f32.mrb[0].mxu0
    %v1624 = vadd.f32 0.0, %v1623
    %v1625 = vpop.f32.mrb[0].mxu0
    %v1626 = vpop.f32.mrb[0].mxu0
    %v1627 = vadd.f32 0.0, %v1626
    %v1628 = vpop.f32.mrb[0].mxu0
    %1629 = vmatprep.mubr.bf16.mxu0 %v882
    %1630 = vmatmul.mubr.bf16.gmra.mrb[0].mxu0 %v881
    %v1631 = vpop.f32.mrb[0].mxu0
    %v1632 = vadd.f32 0.0, %v1631
    %v1633 = vpop.f32.mrb[0].mxu0
    %v1634 = vpop.f32.mrb[0].mxu0
    %v1635 = vadd.f32 0.0, %v1634
    %v1636 = vpop.f32.mrb[0].mxu0
    %1637 = vmatprep.mubr.bf16.mxu0 %v891
    %1638 = vmatmul.mubr.bf16.gmra.mrb[0].mxu0 %v890
    %v1639 = vpop.f32.mrb[0].mxu0
    %v1640 = vadd.f32 0.0, %v1639
    %v1641 = vpop.f32.mrb[0].mxu0
    %v1642 = vpop.f32.mrb[0].mxu0
    %v1643 = vadd.f32 0.0, %v1642
    %v1644 = vpop.f32.mrb[0].mxu0
    %1645 = vmatprep.mubr.bf16.mxu0 %v900
    %1646 = vmatmul.mubr.bf16.gmra.mrb[0].mxu0 %v899
    %v1647 = vpop.f32.mrb[0].mxu0
    %v1648 = vadd.f32 0.0, %v1647
    %v1649 = vpop.f32.mrb[0].mxu0
    %v1650 = vpop.f32.mrb[0].mxu0
    %v1651 = vadd.f32 0.0, %v1650
    %v1652 = vpop.f32.mrb[0].mxu0
    %1653 = vmatprep.mubr.bf16.mxu0 %v909
    %1654 = vmatmul.mubr.bf16.gmra.mrb[0].mxu0 %v908
    %v1655 = vpop.f32.mrb[0].mxu0
    %v1656 = vadd.f32 0.0, %v1655
    %v1657 = vpop.f32.mrb[0].mxu0
    %v1658 = vpop.f32.mrb[0].mxu0
    %v1659 = vadd.f32 0.0, %v1658
    %v1660 = vpop.f32.mrb[0].mxu0
    %1661 = vmatprep.mubr.bf16.mxu0 %v918
    %1662 = vmatmul.mubr.bf16.gmra.mrb[0].mxu0 %v917
    %v1663 = vpop.f32.mrb[0].mxu0
    %v1664 = vadd.f32 0.0, %v1663
    %v1665 = vpop.f32.mrb[0].mxu0
    %v1666 = vpop.f32.mrb[0].mxu0
    %v1667 = vadd.f32 0.0, %v1666
    %v1668 = vpop.f32.mrb[0].mxu0
    %1669 = vmatprep.mubr.bf16.mxu0 %v927
    %1670 = vmatmul.mubr.bf16.gmra.mrb[0].mxu0 %v926
    %v1671 = vpop.f32.mrb[0].mxu0
    %v1672 = vadd.f32 0.0, %v1671
    %v1673 = vpop.f32.mrb[0].mxu0
    %v1674 = vpop.f32.mrb[0].mxu0
    %v1675 = vadd.f32 0.0, %v1674
    %v1676 = vpop.f32.mrb[0].mxu0
    %1677 = vmatprep.mubr.bf16.mxu0 %v936
    %1678 = vmatmul.mubr.bf16.gmra.mrb[0].mxu0 %v935
    %v1679 = vpop.f32.mrb[0].mxu0
    %v1680 = vadd.f32 0.0, %v1679
    %v1681 = vpop.f32.mrb[0].mxu0
    %v1682 = vpop.f32.mrb[0].mxu0
    %v1683 = vadd.f32 0.0, %v1682
    %v1684 = vpop.f32.mrb[0].mxu0
    %1685 = vmatprep.mubr.bf16.mxu0 %v945
    %1686 = vmatmul.mubr.bf16.gmra.mrb[0].mxu0 %v944
    %v1687 = vpop.f32.mrb[0].mxu0
    %v1688 = vadd.f32 0.0, %v1687
    %v1689 = vpop.f32.mrb[0].mxu0
    %v1690 = vpop.f32.mrb[0].mxu0
    %v1691 = vadd.f32 0.0, %v1690
    %v1692 = vpop.f32.mrb[0].mxu0
    %1693 = vmatprep.mubr.bf16.mxu0 %v954
    %1694 = vmatmul.mubr.bf16.gmra.mrb[0].mxu0 %v953
    %v1695 = vpop.f32.mrb[0].mxu0
    %v1696 = vadd.f32 0.0, %v1695
    %v1697 = vpop.f32.mrb[0].mxu0
    %v1698 = vpop.f32.mrb[0].mxu0
    %v1699 = vadd.f32 0.0, %v1698
    %v1700 = vpop.f32.mrb[0].mxu0
    %1701 = vmatprep.mubr.bf16.mxu0 %v963
    %1702 = vmatmul.mubr.bf16.gmra.mrb[0].mxu0 %v962
    %v1703 = vpop.f32.mrb[0].mxu0
    %v1704 = vadd.f32 0.0, %v1703
    %v1705 = vpop.f32.mrb[0].mxu0
    %v1706 = vpop.f32.mrb[0].mxu0
    %v1707 = vadd.f32 0.0, %v1706
    %v1708 = vpop.f32.mrb[0].mxu0
    %1709 = vmatprep.mubr.bf16.mxu0 %v972
    %1710 = vmatmul.mubr.bf16.gmra.mrb[0].mxu0 %v971
    %v1711 = vpop.f32.mrb[0].mxu0
    %v1712 = vadd.f32 0.0, %v1711
    %v1713 = vpop.f32.mrb[0].mxu0
    %v1714 = vpop.f32.mrb[0].mxu0
    %v1715 = vadd.f32 0.0, %v1714
    %v1716 = vpop.f32.mrb[0].mxu0
    %1717 = vmatprep.mubr.bf16.mxu0 %v981
    %1718 = vmatmul.mubr.bf16.gmra.mrb[0].mxu0 %v980
    %v1719 = vpop.f32.mrb[0].mxu0
    %v1720 = vadd.f32 0.0, %v1719
    %v1721 = vpop.f32.mrb[0].mxu0
    %v1722 = vpop.f32.mrb[0].mxu0
    %v1723 = vadd.f32 0.0, %v1722
    %v1724 = vpop.f32.mrb[0].mxu0
    %1725 = vdwg.mxu0
    %1726 = vmatprep.subr.bf16.mxu0 0
    %1727 = vmatpush1.bf16.msra.mxu0 %v1437
    %1728 = vmatprep.subr.bf16.mxu0 0
    %1729 = vmatpush1.bf16.msra.mxu0 %v1438
    %1730 = vmatprep.subr.bf16.mxu0 0
    %1731 = vmatpush1.bf16.msra.mxu0 %v1439
    %1732 = vmatprep.subr.bf16.mxu0 0
    %1733 = vmatpush1.bf16.msra.mxu0 %v1440
    %1734 = vmatprep.subr.bf16.mxu0 0
    %1735 = vmatpush1.bf16.msra.mxu0 %v1441
    %1736 = vmatprep.subr.bf16.mxu0 0
    %1737 = vmatpush1.bf16.msra.mxu0 %v1442
    %1738 = vmatprep.subr.bf16.mxu0 0
    %1739 = vmatpush1.bf16.msra.mxu0 %v1443
    %1740 = vmatprep.subr.bf16.mxu0 0
    %1741 = vmatpush1.bf16.msra.mxu0 %v1444
    %1742 = vmatprep.subr.bf16.mxu0 0
    %1743 = vmatpush1.bf16.msra.mxu0 %v1445
    %1744 = vmatprep.subr.bf16.mxu0 0
    %1745 = vmatpush1.bf16.msra.mxu0 %v1446
    %1746 = vmatprep.subr.bf16.mxu0 0
    %1747 = vmatpush1.bf16.msra.mxu0 %v1447
    %1748 = vmatprep.subr.bf16.mxu0 0
    %1749 = vmatpush1.bf16.msra.mxu0 %v1448
    %1750 = vmatprep.subr.bf16.mxu0 0
    %1751 = vmatpush1.bf16.msra.mxu0 %v1449
    %1752 = vmatprep.subr.bf16.mxu0 0
    %1753 = vmatpush1.bf16.msra.mxu0 %v1450
    %1754 = vmatprep.subr.bf16.mxu0 0
    %1755 = vmatpush1.bf16.msra.mxu0 %v1451
    %1756 = vmatprep.subr.bf16.mxu0 0
    %1757 = vmatpush1.bf16.msra.mxu0 %v1452
    %1758 = vmatprep.mubr.bf16.mxu0 %v848
    %1759 = vmatmul.mubr.bf16.gmra.mrb[0].mxu0 %v847
    %v1760 = vpop.f32.mrb[0].mxu0
    %v1761 = vadd.f32 %v1600, %v1760
    %v1762 = vpop.f32.mrb[0].mxu0
    %v1763 = vpop.f32.mrb[0].mxu0
    %v1764 = vadd.f32 %v1603, %v1763
    %v1765 = vpop.f32.mrb[0].mxu0
    %1766 = vmatprep.mubr.bf16.mxu0 %v857
    %1767 = vmatmul.mubr.bf16.gmra.mrb[0].mxu0 %v856
    %v1768 = vpop.f32.mrb[0].mxu0
    %v1769 = vadd.f32 %v1608, %v1768
    %v1770 = vpop.f32.mrb[0].mxu0
    %v1771 = vpop.f32.mrb[0].mxu0
    %v1772 = vadd.f32 %v1611, %v1771
    %v1773 = vpop.f32.mrb[0].mxu0
    %1774 = vmatprep.mubr.bf16.mxu0 %v866
    %1775 = vmatmul.mubr.bf16.gmra.mrb[0].mxu0 %v865
    %v1776 = vpop.f32.mrb[0].mxu0
    %v1777 = vadd.f32 %v1616, %v1776
    %v1778 = vpop.f32.mrb[0].mxu0
    %v1779 = vpop.f32.mrb[0].mxu0
    %v1780 = vadd.f32 %v1619, %v1779
    %v1781 = vpop.f32.mrb[0].mxu0
    %1782 = vmatprep.mubr.bf16.mxu0 %v875
    %1783 = vmatmul.mubr.bf16.gmra.mrb[0].mxu0 %v874
    %v1784 = vpop.f32.mrb[0].mxu0
    %v1785 = vadd.f32 %v1624, %v1784
    %v1786 = vpop.f32.mrb[0].mxu0
    %v1787 = vpop.f32.mrb[0].mxu0
    %v1788 = vadd.f32 %v1627, %v1787
    %v1789 = vpop.f32.mrb[0].mxu0
    %1790 = vmatprep.mubr.bf16.mxu0 %v884
    %1791 = vmatmul.mubr.bf16.gmra.mrb[0].mxu0 %v883
    %v1792 = vpop.f32.mrb[0].mxu0
    %v1793 = vadd.f32 %v1632, %v1792
    %v1794 = vpop.f32.mrb[0].mxu0
    %v1795 = vpop.f32.mrb[0].mxu0
    %v1796 = vadd.f32 %v1635, %v1795
    %v1797 = vpop.f32.mrb[0].mxu0
    %1798 = vmatprep.mubr.bf16.mxu0 %v893
    %1799 = vmatmul.mubr.bf16.gmra.mrb[0].mxu0 %v892
    %v1800 = vpop.f32.mrb[0].mxu0
    %v1801 = vadd.f32 %v1640, %v1800
    %v1802 = vpop.f32.mrb[0].mxu0
    %v1803 = vpop.f32.mrb[0].mxu0
    %v1804 = vadd.f32 %v1643, %v1803
    %v1805 = vpop.f32.mrb[0].mxu0
    %1806 = vmatprep.mubr.bf16.mxu0 %v902
    %1807 = vmatmul.mubr.bf16.gmra.mrb[0].mxu0 %v901
    %v1808 = vpop.f32.mrb[0].mxu0
    %v1809 = vadd.f32 %v1648, %v1808
    %v1810 = vpop.f32.mrb[0].mxu0
    %v1811 = vpop.f32.mrb[0].mxu0
    %v1812 = vadd.f32 %v1651, %v1811
    %v1813 = vpop.f32.mrb[0].mxu0
    %1814 = vmatprep.mubr.bf16.mxu0 %v911
    %1815 = vmatmul.mubr.bf16.gmra.mrb[0].mxu0 %v910
    %v1816 = vpop.f32.mrb[0].mxu0
    %v1817 = vadd.f32 %v1656, %v1816
    %v1818 = vpop.f32.mrb[0].mxu0
    %v1819 = vpop.f32.mrb[0].mxu0
    %v1820 = vadd.f32 %v1659, %v1819
    %v1821 = vpop.f32.mrb[0].mxu0
    %1822 = vmatprep.mubr.bf16.mxu0 %v920
    %1823 = vmatmul.mubr.bf16.gmra.mrb[0].mxu0 %v919
    %v1824 = vpop.f32.mrb[0].mxu0
    %v1825 = vadd.f32 %v1664, %v1824
    %v1826 = vpop.f32.mrb[0].mxu0
    %v1827 = vpop.f32.mrb[0].mxu0
    %v1828 = vadd.f32 %v1667, %v1827
    %v1829 = vpop.f32.mrb[0].mxu0
    %1830 = vmatprep.mubr.bf16.mxu0 %v929
    %1831 = vmatmul.mubr.bf16.gmra.mrb[0].mxu0 %v928
    %v1832 = vpop.f32.mrb[0].mxu0
    %v1833 = vadd.f32 %v1672, %v1832
    %v1834 = vpop.f32.mrb[0].mxu0
    %v1835 = vpop.f32.mrb[0].mxu0
    %v1836 = vadd.f32 %v1675, %v1835
    %v1837 = vpop.f32.mrb[0].mxu0
    %1838 = vmatprep.mubr.bf16.mxu0 %v938
    %1839 = vmatmul.mubr.bf16.gmra.mrb[0].mxu0 %v937
    %v1840 = vpop.f32.mrb[0].mxu0
    %v1841 = vadd.f32 %v1680, %v1840
    %v1842 = vpop.f32.mrb[0].mxu0
    %v1843 = vpop.f32.mrb[0].mxu0
    %v1844 = vadd.f32 %v1683, %v1843
    %v1845 = vpop.f32.mrb[0].mxu0
    %1846 = vmatprep.mubr.bf16.mxu0 %v947
    %1847 = vmatmul.mubr.bf16.gmra.mrb[0].mxu0 %v946
    %v1848 = vpop.f32.mrb[0].mxu0
    %v1849 = vadd.f32 %v1688, %v1848
    %v1850 = vpop.f32.mrb[0].mxu0
    %v1851 = vpop.f32.mrb[0].mxu0
    %v1852 = vadd.f32 %v1691, %v1851
    %v1853 = vpop.f32.mrb[0].mxu0
    %1854 = vmatprep.mubr.bf16.mxu0 %v956
    %1855 = vmatmul.mubr.bf16.gmra.mrb[0].mxu0 %v955
    %v1856 = vpop.f32.mrb[0].mxu0
    %v1857 = vadd.f32 %v1696, %v1856
    %v1858 = vpop.f32.mrb[0].mxu0
    %v1859 = vpop.f32.mrb[0].mxu0
    %v1860 = vadd.f32 %v1699, %v1859
    %v1861 = vpop.f32.mrb[0].mxu0
    %1862 = vmatprep.mubr.bf16.mxu0 %v965
    %1863 = vmatmul.mubr.bf16.gmra.mrb[0].mxu0 %v964
    %v1864 = vpop.f32.mrb[0].mxu0
    %v1865 = vadd.f32 %v1704, %v1864
    %v1866 = vpop.f32.mrb[0].mxu0
    %v1867 = vpop.f32.mrb[0].mxu0
    %v1868 = vadd.f32 %v1707, %v1867
    %v1869 = vpop.f32.mrb[0].mxu0
    %1870 = vmatprep.mubr.bf16.mxu0 %v974
    %1871 = vmatmul.mubr.bf16.gmra.mrb[0].mxu0 %v973
    %v1872 = vpop.f32.mrb[0].mxu0
    %v1873 = vadd.f32 %v1712, %v1872
    %v1874 = vpop.f32.mrb[0].mxu0
    %v1875 = vpop.f32.mrb[0].mxu0
    %v1876 = vadd.f32 %v1715, %v1875
    %v1877 = vpop.f32.mrb[0].mxu0
    %1878 = vmatprep.mubr.bf16.mxu0 %v983
    %1879 = vmatmul.mubr.bf16.gmra.mrb[0].mxu0 %v982
    %v1880 = vpop.f32.mrb[0].mxu0
    %v1881 = vadd.f32 %v1720, %v1880
    %v1882 = vpop.f32.mrb[0].mxu0
    %v1883 = vpop.f32.mrb[0].mxu0
    %v1884 = vadd.f32 %v1723, %v1883
    %v1885 = vpop.f32.mrb[0].mxu0
    %1886 = vdwg.mxu0
    %1887 = vmatprep.subr.bf16.mxu0 0
    %1888 = vmatpush1.bf16.msra.mxu0 %v1453
    %1889 = vmatprep.subr.bf16.mxu0 0
    %1890 = vmatpush1.bf16.msra.mxu0 %v1454
    %1891 = vmatprep.subr.bf16.mxu0 0
    %1892 = vmatpush1.bf16.msra.mxu0 %v1455
    %1893 = vmatprep.subr.bf16.mxu0 0
    %1894 = vmatpush1.bf16.msra.mxu0 %v1456
    %1895 = vmatprep.subr.bf16.mxu0 0
    %1896 = vmatpush1.bf16.msra.mxu0 %v1457
    %1897 = vmatprep.subr.bf16.mxu0 0
    %1898 = vmatpush1.bf16.msra.mxu0 %v1458
    %1899 = vmatprep.subr.bf16.mxu0 0
    %1900 = vmatpush1.bf16.msra.mxu0 %v1459
    %1901 = vmatprep.subr.bf16.mxu0 0
    %1902 = vmatpush1.bf16.msra.mxu0 %v1460
    %1903 = vmatprep.subr.bf16.mxu0 0
    %1904 = vmatpush1.bf16.msra.mxu0 %v1461
    %1905 = vmatprep.subr.bf16.mxu0 0
    %1906 = vmatpush1.bf16.msra.mxu0 %v1462
    %1907 = vmatprep.subr.bf16.mxu0 0
    %1908 = vmatpush1.bf16.msra.mxu0 %v1463
    %1909 = vmatprep.subr.bf16.mxu0 0
    %1910 = vmatpush1.bf16.msra.mxu0 %v1464
    %1911 = vmatprep.subr.bf16.mxu0 0
    %1912 = vmatpush1.bf16.msra.mxu0 %v1465
    %1913 = vmatprep.subr.bf16.mxu0 0
    %1914 = vmatpush1.bf16.msra.mxu0 %v1466
    %1915 = vmatprep.subr.bf16.mxu0 0
    %1916 = vmatpush1.bf16.msra.mxu0 %v1467
    %1917 = vmatprep.subr.bf16.mxu0 0
    %1918 = vmatpush1.bf16.msra.mxu0 %v1468
    %1919 = vmatprep.mubr.bf16.mxu0 %v850
    %1920 = vmatmul.mubr.bf16.gmra.mrb[0].mxu0 %v849
    %v1921 = vpop.f32.mrb[0].mxu0
    %v1922 = vadd.f32 %v1761, %v1921
    %v1923 = vpop.f32.mrb[0].mxu0
    %v1924 = vpop.f32.mrb[0].mxu0
    %v1925 = vadd.f32 %v1764, %v1924
    %v1926 = vpop.f32.mrb[0].mxu0
    %1927 = vmatprep.mubr.bf16.mxu0 %v859
    %1928 = vmatmul.mubr.bf16.gmra.mrb[0].mxu0 %v858
    %v1929 = vpop.f32.mrb[0].mxu0
    %v1930 = vadd.f32 %v1769, %v1929
    %v1931 = vpop.f32.mrb[0].mxu0
    %v1932 = vpop.f32.mrb[0].mxu0
    %v1933 = vadd.f32 %v1772, %v1932
    %v1934 = vpop.f32.mrb[0].mxu0
    %1935 = vmatprep.mubr.bf16.mxu0 %v868
    %1936 = vmatmul.mubr.bf16.gmra.mrb[0].mxu0 %v867
    %v1937 = vpop.f32.mrb[0].mxu0
    %v1938 = vadd.f32 %v1777, %v1937
    %v1939 = vpop.f32.mrb[0].mxu0
    %v1940 = vpop.f32.mrb[0].mxu0
    %v1941 = vadd.f32 %v1780, %v1940
    %v1942 = vpop.f32.mrb[0].mxu0
    %1943 = vmatprep.mubr.bf16.mxu0 %v877
    %1944 = vmatmul.mubr.bf16.gmra.mrb[0].mxu0 %v876
    %v1945 = vpop.f32.mrb[0].mxu0
    %v1946 = vadd.f32 %v1785, %v1945
    %v1947 = vpop.f32.mrb[0].mxu0
    %v1948 = vpop.f32.mrb[0].mxu0
    %v1949 = vadd.f32 %v1788, %v1948
    %v1950 = vpop.f32.mrb[0].mxu0
    %1951 = vmatprep.mubr.bf16.mxu0 %v886
    %1952 = vmatmul.mubr.bf16.gmra.mrb[0].mxu0 %v885
    %v1953 = vpop.f32.mrb[0].mxu0
    %v1954 = vadd.f32 %v1793, %v1953
    %v1955 = vpop.f32.mrb[0].mxu0
    %v1956 = vpop.f32.mrb[0].mxu0
    %v1957 = vadd.f32 %v1796, %v1956
    %v1958 = vpop.f32.mrb[0].mxu0
    %1959 = vmatprep.mubr.bf16.mxu0 %v895
    %1960 = vmatmul.mubr.bf16.gmra.mrb[0].mxu0 %v894
    %v1961 = vpop.f32.mrb[0].mxu0
    %v1962 = vadd.f32 %v1801, %v1961
    %v1963 = vpop.f32.mrb[0].mxu0
    %v1964 = vpop.f32.mrb[0].mxu0
    %v1965 = vadd.f32 %v1804, %v1964
    %v1966 = vpop.f32.mrb[0].mxu0
    %1967 = vmatprep.mubr.bf16.mxu0 %v904
    %1968 = vmatmul.mubr.bf16.gmra.mrb[0].mxu0 %v903
    %v1969 = vpop.f32.mrb[0].mxu0
    %v1970 = vadd.f32 %v1809, %v1969
    %v1971 = vpop.f32.mrb[0].mxu0
    %v1972 = vpop.f32.mrb[0].mxu0
    %v1973 = vadd.f32 %v1812, %v1972
    %v1974 = vpop.f32.mrb[0].mxu0
    %1975 = vmatprep.mubr.bf16.mxu0 %v913
    %1976 = vmatmul.mubr.bf16.gmra.mrb[0].mxu0 %v912
    %v1977 = vpop.f32.mrb[0].mxu0
    %v1978 = vadd.f32 %v1817, %v1977
    %v1979 = vpop.f32.mrb[0].mxu0
    %v1980 = vpop.f32.mrb[0].mxu0
    %v1981 = vadd.f32 %v1820, %v1980
    %v1982 = vpop.f32.mrb[0].mxu0
    %1983 = vmatprep.mubr.bf16.mxu0 %v922
    %1984 = vmatmul.mubr.bf16.gmra.mrb[0].mxu0 %v921
    %v1985 = vpop.f32.mrb[0].mxu0
    %v1986 = vadd.f32 %v1825, %v1985
    %v1987 = vpop.f32.mrb[0].mxu0
    %v1988 = vpop.f32.mrb[0].mxu0
    %v1989 = vadd.f32 %v1828, %v1988
    %v1990 = vpop.f32.mrb[0].mxu0
    %1991 = vmatprep.mubr.bf16.mxu0 %v931
    %1992 = vmatmul.mubr.bf16.gmra.mrb[0].mxu0 %v930
    %v1993 = vpop.f32.mrb[0].mxu0
    %v1994 = vadd.f32 %v1833, %v1993
    %v1995 = vpop.f32.mrb[0].mxu0
    %v1996 = vpop.f32.mrb[0].mxu0
    %v1997 = vadd.f32 %v1836, %v1996
    %v1998 = vpop.f32.mrb[0].mxu0
    %1999 = vmatprep.mubr.bf16.mxu0 %v940
    %2000 = vmatmul.mubr.bf16.gmra.mrb[0].mxu0 %v939
    %v2001 = vpop.f32.mrb[0].mxu0
    %v2002 = vadd.f32 %v1841, %v2001
    %v2003 = vpop.f32.mrb[0].mxu0
    %v2004 = vpop.f32.mrb[0].mxu0
    %v2005 = vadd.f32 %v1844, %v2004
    %v2006 = vpop.f32.mrb[0].mxu0
    %2007 = vmatprep.mubr.bf16.mxu0 %v949
    %2008 = vmatmul.mubr.bf16.gmra.mrb[0].mxu0 %v948
    %v2009 = vpop.f32.mrb[0].mxu0
    %v2010 = vadd.f32 %v1849, %v2009
    %v2011 = vpop.f32.mrb[0].mxu0
    %v2012 = vpop.f32.mrb[0].mxu0
    %v2013 = vadd.f32 %v1852, %v2012
    %v2014 = vpop.f32.mrb[0].mxu0
    %2015 = vmatprep.mubr.bf16.mxu0 %v958
    %2016 = vmatmul.mubr.bf16.gmra.mrb[0].mxu0 %v957
    %v2017 = vpop.f32.mrb[0].mxu0
    %v2018 = vadd.f32 %v1857, %v2017
    %v2019 = vpop.f32.mrb[0].mxu0
    %v2020 = vpop.f32.mrb[0].mxu0
    %v2021 = vadd.f32 %v1860, %v2020
    %v2022 = vpop.f32.mrb[0].mxu0
    %2023 = vmatprep.mubr.bf16.mxu0 %v967
    %2024 = vmatmul.mubr.bf16.gmra.mrb[0].mxu0 %v966
    %v2025 = vpop.f32.mrb[0].mxu0
    %v2026 = vadd.f32 %v1865, %v2025
    %v2027 = vpop.f32.mrb[0].mxu0
    %v2028 = vpop.f32.mrb[0].mxu0
    %v2029 = vadd.f32 %v1868, %v2028
    %v2030 = vpop.f32.mrb[0].mxu0
    %2031 = vmatprep.mubr.bf16.mxu0 %v976
    %2032 = vmatmul.mubr.bf16.gmra.mrb[0].mxu0 %v975
    %v2033 = vpop.f32.mrb[0].mxu0
    %v2034 = vadd.f32 %v1873, %v2033
    %v2035 = vpop.f32.mrb[0].mxu0
    %v2036 = vpop.f32.mrb[0].mxu0
    %v2037 = vadd.f32 %v1876, %v2036
    %v2038 = vpop.f32.mrb[0].mxu0
    %2039 = vmatprep.mubr.bf16.mxu0 %v985
    %2040 = vmatmul.mubr.bf16.gmra.mrb[0].mxu0 %v984
    %v2041 = vpop.f32.mrb[0].mxu0
    %v2042 = vadd.f32 %v1881, %v2041
    %v2043 = vpop.f32.mrb[0].mxu0
    %v2044 = vpop.f32.mrb[0].mxu0
    %v2045 = vadd.f32 %v1884, %v2044
    %v2046 = vpop.f32.mrb[0].mxu0
    %2047 = vdwg.mxu0
    %2048 = vmatprep.subr.bf16.mxu0 0
    %2049 = vmatpush1.bf16.msra.mxu0 %v1469
    %2050 = vmatprep.subr.bf16.mxu0 0
    %2051 = vmatpush1.bf16.msra.mxu0 %v1470
    %2052 = vmatprep.subr.bf16.mxu0 0
    %2053 = vmatpush1.bf16.msra.mxu0 %v1471
    %2054 = vmatprep.subr.bf16.mxu0 0
    %2055 = vmatpush1.bf16.msra.mxu0 %v1472
    %2056 = vmatprep.subr.bf16.mxu0 0
    %2057 = vmatpush1.bf16.msra.mxu0 %v1473
    %2058 = vmatprep.subr.bf16.mxu0 0
    %2059 = vmatpush1.bf16.msra.mxu0 %v1474
    %2060 = vmatprep.subr.bf16.mxu0 0
    %2061 = vmatpush1.bf16.msra.mxu0 %v1475
    %2062 = vmatprep.subr.bf16.mxu0 0
    %2063 = vmatpush1.bf16.msra.mxu0 %v1476
    %2064 = vmatprep.subr.bf16.mxu0 0
    %2065 = vmatpush1.bf16.msra.mxu0 %v1477
    %2066 = vmatprep.subr.bf16.mxu0 0
    %2067 = vmatpush1.bf16.msra.mxu0 %v1478
    %2068 = vmatprep.subr.bf16.mxu0 0
    %2069 = vmatpush1.bf16.msra.mxu0 %v1479
    %2070 = vmatprep.subr.bf16.mxu0 0
    %2071 = vmatpush1.bf16.msra.mxu0 %v1480
    %2072 = vmatprep.subr.bf16.mxu0 0
    %2073 = vmatpush1.bf16.msra.mxu0 %v1481
    %2074 = vmatprep.subr.bf16.mxu0 0
    %2075 = vmatpush1.bf16.msra.mxu0 %v1482
    %2076 = vmatprep.subr.bf16.mxu0 0
    %2077 = vmatpush1.bf16.msra.mxu0 %v1483
    %2078 = vmatprep.subr.bf16.mxu0 0
    %2079 = vmatpush1.bf16.msra.mxu0 %v1484
    %2080 = vmatprep.mubr.bf16.mxu0 %v852
    %2081 = vmatmul.mubr.bf16.gmra.mrb[0].mxu0 %v851
    %v2082 = vpop.f32.mrb[0].mxu0
    %v2083 = vadd.f32 %v1922, %v2082
    %v2084 = vpop.f32.mrb[0].mxu0
    %v2085 = vpop.f32.mrb[0].mxu0
    %v2086 = vadd.f32 %v1925, %v2085
    %v2087 = vpop.f32.mrb[0].mxu0
    %2088 = vmatprep.mubr.bf16.mxu0 %v861
    %2089 = vmatmul.mubr.bf16.gmra.mrb[0].mxu0 %v860
    %v2090 = vpop.f32.mrb[0].mxu0
    %v2091 = vadd.f32 %v1930, %v2090
    %v2092 = vpop.f32.mrb[0].mxu0
    %v2093 = vpop.f32.mrb[0].mxu0
    %v2094 = vadd.f32 %v1933, %v2093
    %v2095 = vpop.f32.mrb[0].mxu0
    %2096 = vmatprep.mubr.bf16.mxu0 %v870
    %2097 = vmatmul.mubr.bf16.gmra.mrb[0].mxu0 %v869
    %v2098 = vpop.f32.mrb[0].mxu0
    %v2099 = vadd.f32 %v1938, %v2098
    %v2100 = vpop.f32.mrb[0].mxu0
    %v2101 = vpop.f32.mrb[0].mxu0
    %v2102 = vadd.f32 %v1941, %v2101
    %v2103 = vpop.f32.mrb[0].mxu0
    %2104 = vmatprep.mubr.bf16.mxu0 %v879
    %2105 = vmatmul.mubr.bf16.gmra.mrb[0].mxu0 %v878
    %v2106 = vpop.f32.mrb[0].mxu0
    %v2107 = vadd.f32 %v1946, %v2106
    %v2108 = vpop.f32.mrb[0].mxu0
    %v2109 = vpop.f32.mrb[0].mxu0
    %v2110 = vadd.f32 %v1949, %v2109
    %v2111 = vpop.f32.mrb[0].mxu0
    %2112 = vmatprep.mubr.bf16.mxu0 %v888
    %2113 = vmatmul.mubr.bf16.gmra.mrb[0].mxu0 %v887
    %v2114 = vpop.f32.mrb[0].mxu0
    %v2115 = vadd.f32 %v1954, %v2114
    %v2116 = vpop.f32.mrb[0].mxu0
    %v2117 = vpop.f32.mrb[0].mxu0
    %v2118 = vadd.f32 %v1957, %v2117
    %v2119 = vpop.f32.mrb[0].mxu0
    %2120 = vmatprep.mubr.bf16.mxu0 %v897
    %2121 = vmatmul.mubr.bf16.gmra.mrb[0].mxu0 %v896
    %v2122 = vpop.f32.mrb[0].mxu0
    %v2123 = vadd.f32 %v1962, %v2122
    %v2124 = vpop.f32.mrb[0].mxu0
    %v2125 = vpop.f32.mrb[0].mxu0
    %v2126 = vadd.f32 %v1965, %v2125
    %v2127 = vpop.f32.mrb[0].mxu0
    %2128 = vmatprep.mubr.bf16.mxu0 %v906
    %2129 = vmatmul.mubr.bf16.gmra.mrb[0].mxu0 %v905
    %v2130 = vpop.f32.mrb[0].mxu0
    %v2131 = vadd.f32 %v1970, %v2130
    %v2132 = vpop.f32.mrb[0].mxu0
    %v2133 = vpop.f32.mrb[0].mxu0
    %v2134 = vadd.f32 %v1973, %v2133
    %v2135 = vpop.f32.mrb[0].mxu0
    %2136 = vmatprep.mubr.bf16.mxu0 %v915
    %2137 = vmatmul.mubr.bf16.gmra.mrb[0].mxu0 %v914
    %v2138 = vpop.f32.mrb[0].mxu0
    %v2139 = vadd.f32 %v1978, %v2138
    %v2140 = vpop.f32.mrb[0].mxu0
    %v2141 = vpop.f32.mrb[0].mxu0
    %v2142 = vadd.f32 %v1981, %v2141
    %v2143 = vpop.f32.mrb[0].mxu0
    %2144 = vmatprep.mubr.bf16.mxu0 %v924
    %2145 = vmatmul.mubr.bf16.gmra.mrb[0].mxu0 %v923
    %v2146 = vpop.f32.mrb[0].mxu0
    %v2147 = vadd.f32 %v1986, %v2146
    %v2148 = vpop.f32.mrb[0].mxu0
    %v2149 = vpop.f32.mrb[0].mxu0
    %v2150 = vadd.f32 %v1989, %v2149
    %v2151 = vpop.f32.mrb[0].mxu0
    %2152 = vmatprep.mubr.bf16.mxu0 %v933
    %2153 = vmatmul.mubr.bf16.gmra.mrb[0].mxu0 %v932
    %v2154 = vpop.f32.mrb[0].mxu0
    %v2155 = vadd.f32 %v1994, %v2154
    %v2156 = vpop.f32.mrb[0].mxu0
    %v2157 = vpop.f32.mrb[0].mxu0
    %v2158 = vadd.f32 %v1997, %v2157
    %v2159 = vpop.f32.mrb[0].mxu0
    %2160 = vmatprep.mubr.bf16.mxu0 %v942
    %2161 = vmatmul.mubr.bf16.gmra.mrb[0].mxu0 %v941
    %v2162 = vpop.f32.mrb[0].mxu0
    %v2163 = vadd.f32 %v2002, %v2162
    %v2164 = vpop.f32.mrb[0].mxu0
    %v2165 = vpop.f32.mrb[0].mxu0
    %v2166 = vadd.f32 %v2005, %v2165
    %v2167 = vpop.f32.mrb[0].mxu0
    %2168 = vmatprep.mubr.bf16.mxu0 %v951
    %2169 = vmatmul.mubr.bf16.gmra.mrb[0].mxu0 %v950
    %v2170 = vpop.f32.mrb[0].mxu0
    %v2171 = vadd.f32 %v2010, %v2170
    %v2172 = vpop.f32.mrb[0].mxu0
    %v2173 = vpop.f32.mrb[0].mxu0
    %v2174 = vadd.f32 %v2013, %v2173
    %v2175 = vpop.f32.mrb[0].mxu0
    %2176 = vmatprep.mubr.bf16.mxu0 %v960
    %2177 = vmatmul.mubr.bf16.gmra.mrb[0].mxu0 %v959
    %v2178 = vpop.f32.mrb[0].mxu0
    %v2179 = vadd.f32 %v2018, %v2178
    %v2180 = vpop.f32.mrb[0].mxu0
    %v2181 = vpop.f32.mrb[0].mxu0
    %v2182 = vadd.f32 %v2021, %v2181
    %v2183 = vpop.f32.mrb[0].mxu0
    %2184 = vmatprep.mubr.bf16.mxu0 %v969
    %2185 = vmatmul.mubr.bf16.gmra.mrb[0].mxu0 %v968
    %v2186 = vpop.f32.mrb[0].mxu0
    %v2187 = vadd.f32 %v2026, %v2186
    %v2188 = vpop.f32.mrb[0].mxu0
    %v2189 = vpop.f32.mrb[0].mxu0
    %v2190 = vadd.f32 %v2029, %v2189
    %v2191 = vpop.f32.mrb[0].mxu0
    %2192 = vmatprep.mubr.bf16.mxu0 %v978
    %2193 = vmatmul.mubr.bf16.gmra.mrb[0].mxu0 %v977
    %v2194 = vpop.f32.mrb[0].mxu0
    %v2195 = vadd.f32 %v2034, %v2194
    %v2196 = vpop.f32.mrb[0].mxu0
    %v2197 = vpop.f32.mrb[0].mxu0
    %v2198 = vadd.f32 %v2037, %v2197
    %v2199 = vpop.f32.mrb[0].mxu0
    %2200 = vmatprep.mubr.bf16.mxu0 %v987
    %2201 = vmatmul.mubr.bf16.gmra.mrb[0].mxu0 %v986
    %v2202 = vpop.f32.mrb[0].mxu0
    %v2203 = vadd.f32 %v2042, %v2202
    %v2204 = vpop.f32.mrb[0].mxu0
    %v2205 = vpop.f32.mrb[0].mxu0
    %v2206 = vadd.f32 %v2045, %v2205
    %v2207 = vpop.f32.mrb[0].mxu0
    %2208 = vdwg.mxu0
    %2209 = vmatprep.subr.bf16.mxu0 0
    %2210 = vmatpush1.bf16.msra.mxu0 %v1485
    %2211 = vmatprep.subr.bf16.mxu0 0
    %2212 = vmatpush1.bf16.msra.mxu0 %v1486
    %2213 = vmatprep.subr.bf16.mxu0 0
    %2214 = vmatpush1.bf16.msra.mxu0 %v1487
    %2215 = vmatprep.subr.bf16.mxu0 0
    %2216 = vmatpush1.bf16.msra.mxu0 %v1488
    %2217 = vmatprep.subr.bf16.mxu0 0
    %2218 = vmatpush1.bf16.msra.mxu0 %v1489
    %2219 = vmatprep.subr.bf16.mxu0 0
    %2220 = vmatpush1.bf16.msra.mxu0 %v1490
    %2221 = vmatprep.subr.bf16.mxu0 0
    %2222 = vmatpush1.bf16.msra.mxu0 %v1491
    %2223 = vmatprep.subr.bf16.mxu0 0
    %2224 = vmatpush1.bf16.msra.mxu0 %v1492
    %2225 = vmatprep.subr.bf16.mxu0 0
    %2226 = vmatpush1.bf16.msra.mxu0 0
    %2227 = vmatprep.subr.bf16.mxu0 0
    %2228 = vmatpush1.bf16.msra.mxu0 0
    %2229 = vmatprep.subr.bf16.mxu0 0
    %2230 = vmatpush1.bf16.msra.mxu0 0
    %2231 = vmatprep.subr.bf16.mxu0 0
    %2232 = vmatpush1.bf16.msra.mxu0 0
    %2233 = vmatprep.subr.bf16.mxu0 0
    %2234 = vmatpush1.bf16.msra.mxu0 0
    %2235 = vmatprep.subr.bf16.mxu0 0
    %2236 = vmatpush1.bf16.msra.mxu0 0
    %2237 = vmatprep.subr.bf16.mxu0 0
    %2238 = vmatpush1.bf16.msra.mxu0 0
    %2239 = vmatprep.subr.bf16.mxu0 0
    %2240 = vmatpush1.bf16.msra.mxu0 0
    %2241 = vmatprep.mubr.bf16.mxu0 0
    %2242 = vmatmul.mubr.bf16.gmra.mrb[0].mxu0 %v853
    %v2243 = vpop.f32.mrb[0].mxu0
    %v2244 = vadd.f32 %v2083, %v2243
    %v2245 = vpop.f32.mrb[0].mxu0
    %v2246 = vpop.f32.mrb[0].mxu0
    %v2247 = vadd.f32 %v2086, %v2246
    %v2248 = vpop.f32.mrb[0].mxu0
    %2249 = vmatprep.mubr.bf16.mxu0 0
    %2250 = vmatmul.mubr.bf16.gmra.mrb[0].mxu0 %v862
    %v2251 = vpop.f32.mrb[0].mxu0
    %v2252 = vadd.f32 %v2091, %v2251
    %v2253 = vpop.f32.mrb[0].mxu0
    %v2254 = vpop.f32.mrb[0].mxu0
    %v2255 = vadd.f32 %v2094, %v2254
    %v2256 = vpop.f32.mrb[0].mxu0
    %2257 = vmatprep.mubr.bf16.mxu0 0
    %2258 = vmatmul.mubr.bf16.gmra.mrb[0].mxu0 %v871
    %v2259 = vpop.f32.mrb[0].mxu0
    %v2260 = vadd.f32 %v2099, %v2259
    %v2261 = vpop.f32.mrb[0].mxu0
    %v2262 = vpop.f32.mrb[0].mxu0
    %v2263 = vadd.f32 %v2102, %v2262
    %v2264 = vpop.f32.mrb[0].mxu0
    %2265 = vmatprep.mubr.bf16.mxu0 0
    %2266 = vmatmul.mubr.bf16.gmra.mrb[0].mxu0 %v880
    %v2267 = vpop.f32.mrb[0].mxu0
    %v2268 = vadd.f32 %v2107, %v2267
    %v2269 = vpop.f32.mrb[0].mxu0
    %v2270 = vpop.f32.mrb[0].mxu0
    %v2271 = vadd.f32 %v2110, %v2270
    %v2272 = vpop.f32.mrb[0].mxu0
    %2273 = vmatprep.mubr.bf16.mxu0 0
    %2274 = vmatmul.mubr.bf16.gmra.mrb[0].mxu0 %v889
    %v2275 = vpop.f32.mrb[0].mxu0
    %v2276 = vadd.f32 %v2115, %v2275
    %v2277 = vpop.f32.mrb[0].mxu0
    %v2278 = vpop.f32.mrb[0].mxu0
    %v2279 = vadd.f32 %v2118, %v2278
    %v2280 = vpop.f32.mrb[0].mxu0
    %2281 = vmatprep.mubr.bf16.mxu0 0
    %2282 = vmatmul.mubr.bf16.gmra.mrb[0].mxu0 %v898
    %v2283 = vpop.f32.mrb[0].mxu0
    %v2284 = vadd.f32 %v2123, %v2283
    %v2285 = vpop.f32.mrb[0].mxu0
    %v2286 = vpop.f32.mrb[0].mxu0
    %v2287 = vadd.f32 %v2126, %v2286
    %v2288 = vpop.f32.mrb[0].mxu0
    %2289 = vmatprep.mubr.bf16.mxu0 0
    %2290 = vmatmul.mubr.bf16.gmra.mrb[0].mxu0 %v907
    %v2291 = vpop.f32.mrb[0].mxu0
    %v2292 = vadd.f32 %v2131, %v2291
    %v2293 = vpop.f32.mrb[0].mxu0
    %v2294 = vpop.f32.mrb[0].mxu0
    %v2295 = vadd.f32 %v2134, %v2294
    %v2296 = vpop.f32.mrb[0].mxu0
    %2297 = vmatprep.mubr.bf16.mxu0 0
    %2298 = vmatmul.mubr.bf16.gmra.mrb[0].mxu0 %v916
    %v2299 = vpop.f32.mrb[0].mxu0
    %v2300 = vadd.f32 %v2139, %v2299
    %v2301 = vpop.f32.mrb[0].mxu0
    %v2302 = vpop.f32.mrb[0].mxu0
    %v2303 = vadd.f32 %v2142, %v2302
    %v2304 = vpop.f32.mrb[0].mxu0
    %2305 = vmatprep.mubr.bf16.mxu0 0
    %2306 = vmatmul.mubr.bf16.gmra.mrb[0].mxu0 %v925
    %v2307 = vpop.f32.mrb[0].mxu0
    %v2308 = vadd.f32 %v2147, %v2307
    %v2309 = vpop.f32.mrb[0].mxu0
    %v2310 = vpop.f32.mrb[0].mxu0
    %v2311 = vadd.f32 %v2150, %v2310
    %v2312 = vpop.f32.mrb[0].mxu0
    %2313 = vmatprep.mubr.bf16.mxu0 0
    %2314 = vmatmul.mubr.bf16.gmra.mrb[0].mxu0 %v934
    %v2315 = vpop.f32.mrb[0].mxu0
    %v2316 = vadd.f32 %v2155, %v2315
    %v2317 = vpop.f32.mrb[0].mxu0
    %v2318 = vpop.f32.mrb[0].mxu0
    %v2319 = vadd.f32 %v2158, %v2318
    %v2320 = vpop.f32.mrb[0].mxu0
    %2321 = vmatprep.mubr.bf16.mxu0 0
    %2322 = vmatmul.mubr.bf16.gmra.mrb[0].mxu0 %v943
    %v2323 = vpop.f32.mrb[0].mxu0
    %v2324 = vadd.f32 %v2163, %v2323
    %v2325 = vpop.f32.mrb[0].mxu0
    %v2326 = vpop.f32.mrb[0].mxu0
    %v2327 = vadd.f32 %v2166, %v2326
    %v2328 = vpop.f32.mrb[0].mxu0
    %2329 = vmatprep.mubr.bf16.mxu0 0
    %2330 = vmatmul.mubr.bf16.gmra.mrb[0].mxu0 %v952
    %v2331 = vpop.f32.mrb[0].mxu0
    %v2332 = vadd.f32 %v2171, %v2331
    %v2333 = vpop.f32.mrb[0].mxu0
    %v2334 = vpop.f32.mrb[0].mxu0
    %v2335 = vadd.f32 %v2174, %v2334
    %v2336 = vpop.f32.mrb[0].mxu0
    %2337 = vmatprep.mubr.bf16.mxu0 0
    %2338 = vmatmul.mubr.bf16.gmra.mrb[0].mxu0 %v961
    %v2339 = vpop.f32.mrb[0].mxu0
    %v2340 = vadd.f32 %v2179, %v2339
    %v2341 = vpop.f32.mrb[0].mxu0
    %v2342 = vpop.f32.mrb[0].mxu0
    %v2343 = vadd.f32 %v2182, %v2342
    %v2344 = vpop.f32.mrb[0].mxu0
    %2345 = vmatprep.mubr.bf16.mxu0 0
    %2346 = vmatmul.mubr.bf16.gmra.mrb[0].mxu0 %v970
    %v2347 = vpop.f32.mrb[0].mxu0
    %v2348 = vadd.f32 %v2187, %v2347
    %v2349 = vpop.f32.mrb[0].mxu0
    %v2350 = vpop.f32.mrb[0].mxu0
    %v2351 = vadd.f32 %v2190, %v2350
    %v2352 = vpop.f32.mrb[0].mxu0
    %2353 = vmatprep.mubr.bf16.mxu0 0
    %2354 = vmatmul.mubr.bf16.gmra.mrb[0].mxu0 %v979
    %v2355 = vpop.f32.mrb[0].mxu0
    %v2356 = vadd.f32 %v2195, %v2355
    %v2357 = vpop.f32.mrb[0].mxu0
    %v2358 = vpop.f32.mrb[0].mxu0
    %v2359 = vadd.f32 %v2198, %v2358
    %v2360 = vpop.f32.mrb[0].mxu0
    %2361 = vmatprep.mubr.bf16.mxu0 0
    %2362 = vmatmul.mubr.bf16.gmra.mrb[0].mxu0 %v988
    %v2363 = vpop.f32.mrb[0].mxu0
    %v2364 = vadd.f32 %v2203, %v2363
    %v2365 = vpop.f32.mrb[0].mxu0
    %v2366 = vpop.f32.mrb[0].mxu0
    %v2367 = vadd.f32 %v2206, %v2366
    %v2368 = vpop.f32.mrb[0].mxu0
    %2369 = vdwg.mxu0
    %v2370 = vld [vmem:[%s5] sm:$0x1]
    %v2371 = vlaneseq
    %v2372 = vshrl.u32 %v2371, 7
    %v2373 = vsub.s32 0, %v2372
    %v2374 = vrot.slane %v2370, %v2373
    %v2375 = vmul.f32 %v2244, %v2374
    %v2376 = vmul.f32 %v2247, %v2374
    %v2377 = vmul.f32 %v2252, %v2374
    %v2378 = vmul.f32 %v2255, %v2374
    %v2379 = vmul.f32 %v2260, %v2374
    %v2380 = vmul.f32 %v2263, %v2374
    %v2381 = vmul.f32 %v2268, %v2374
    %v2382 = vmul.f32 %v2271, %v2374
    %v2383 = vmul.f32 %v2276, %v2374
    %v2384 = vmul.f32 %v2279, %v2374
    %v2385 = vmul.f32 %v2284, %v2374
    %v2386 = vmul.f32 %v2287, %v2374
    %v2387 = vmul.f32 %v2292, %v2374
    %v2388 = vmul.f32 %v2295, %v2374
    %v2389 = vmul.f32 %v2300, %v2374
    %v2390 = vmul.f32 %v2303, %v2374
    %v2391 = vmul.f32 %v2308, %v2374
    %v2392 = vmul.f32 %v2311, %v2374
    %v2393 = vmul.f32 %v2316, %v2374
    %v2394 = vmul.f32 %v2319, %v2374
    %v2395 = vmul.f32 %v2324, %v2374
    %v2396 = vmul.f32 %v2327, %v2374
    %v2397 = vmul.f32 %v2332, %v2374
    %v2398 = vmul.f32 %v2335, %v2374
    %v2399 = vmul.f32 %v2340, %v2374
    %v2400 = vmul.f32 %v2343, %v2374
    %v2401 = vmul.f32 %v2348, %v2374
    %v2402 = vmul.f32 %v2351, %v2374
    %v2403 = vmul.f32 %v2356, %v2374
    %v2404 = vmul.f32 %v2359, %v2374
    %v2405 = vmul.f32 %v2364, %v2374
    %v2406 = vmul.f32 %v2367, %v2374
    %v2407 = vld [vmem:[%s5 + $0x1] sm:$0x1]
    %v2408 = vlaneseq
    %v2409 = vshrl.u32 %v2408, 7
    %v2410 = vsub.s32 0, %v2409
    %v2411 = vrot.slane %v2407, %v2410
    %v2412 = vadd.f32 %v2375, %v2411
    %v2413 = vadd.f32 %v2376, %v2411
    %v2414 = vadd.f32 %v2377, %v2411
    %v2415 = vadd.f32 %v2378, %v2411
    %v2416 = vadd.f32 %v2379, %v2411
    %v2417 = vadd.f32 %v2380, %v2411
    %v2418 = vadd.f32 %v2381, %v2411
    %v2419 = vadd.f32 %v2382, %v2411
    %v2420 = vadd.f32 %v2383, %v2411
    %v2421 = vadd.f32 %v2384, %v2411
    %v2422 = vadd.f32 %v2385, %v2411
    %v2423 = vadd.f32 %v2386, %v2411
    %v2424 = vadd.f32 %v2387, %v2411
    %v2425 = vadd.f32 %v2388, %v2411
    %v2426 = vadd.f32 %v2389, %v2411
    %v2427 = vadd.f32 %v2390, %v2411
    %v2428 = vadd.f32 %v2391, %v2411
    %v2429 = vadd.f32 %v2392, %v2411
    %v2430 = vadd.f32 %v2393, %v2411
    %v2431 = vadd.f32 %v2394, %v2411
    %v2432 = vadd.f32 %v2395, %v2411
    %v2433 = vadd.f32 %v2396, %v2411
    %v2434 = vadd.f32 %v2397, %v2411
    %v2435 = vadd.f32 %v2398, %v2411
    %v2436 = vadd.f32 %v2399, %v2411
    %v2437 = vadd.f32 %v2400, %v2411
    %v2438 = vadd.f32 %v2401, %v2411
    %v2439 = vadd.f32 %v2402, %v2411
    %v2440 = vadd.f32 %v2403, %v2411
    %v2441 = vadd.f32 %v2404, %v2411
    %v2442 = vadd.f32 %v2405, %v2411
    %v2443 = vadd.f32 %v2406, %v2411
    %v2444 = vmax.f32 %v2412, 0.0
    %v2445 = vmax.f32 %v2413, 0.0
    %v2446 = vmax.f32 %v2414, 0.0
    %v2447 = vmax.f32 %v2415, 0.0
    %v2448 = vmax.f32 %v2416, 0.0
    %v2449 = vmax.f32 %v2417, 0.0
    %v2450 = vmax.f32 %v2418, 0.0
    %v2451 = vmax.f32 %v2419, 0.0
    %v2452 = vmax.f32 %v2420, 0.0
    %v2453 = vmax.f32 %v2421, 0.0
    %v2454 = vmax.f32 %v2422, 0.0
    %v2455 = vmax.f32 %v2423, 0.0
    %v2456 = vmax.f32 %v2424, 0.0
    %v2457 = vmax.f32 %v2425, 0.0
    %v2458 = vmax.f32 %v2426, 0.0
    %v2459 = vmax.f32 %v2427, 0.0
    %v2460 = vmax.f32 %v2428, 0.0
    %v2461 = vmax.f32 %v2429, 0.0
    %v2462 = vmax.f32 %v2430, 0.0
    %v2463 = vmax.f32 %v2431, 0.0
    %v2464 = vmax.f32 %v2432, 0.0
    %v2465 = vmax.f32 %v2433, 0.0
    %v2466 = vmax.f32 %v2434, 0.0
    %v2467 = vmax.f32 %v2435, 0.0
    %v2468 = vmax.f32 %v2436, 0.0
    %v2469 = vmax.f32 %v2437, 0.0
    %v2470 = vmax.f32 %v2438, 0.0
    %v2471 = vmax.f32 %v2439, 0.0
    %v2472 = vmax.f32 %v2440, 0.0
    %v2473 = vmax.f32 %v2441, 0.0
    %v2474 = vmax.f32 %v2442, 0.0
    %v2475 = vmax.f32 %v2443, 0.0
    %v2476 = vmin.f32 %v2444, 6.0
    %v2477 = vmin.f32 %v2445, 6.0
    %v2478 = vmin.f32 %v2446, 6.0
    %v2479 = vmin.f32 %v2447, 6.0
    %v2480 = vmin.f32 %v2448, 6.0
    %v2481 = vmin.f32 %v2449, 6.0
    %v2482 = vmin.f32 %v2450, 6.0
    %v2483 = vmin.f32 %v2451, 6.0
    %v2484 = vmin.f32 %v2452, 6.0
    %v2485 = vmin.f32 %v2453, 6.0
    %v2486 = vmin.f32 %v2454, 6.0
    %v2487 = vmin.f32 %v2455, 6.0
    %v2488 = vmin.f32 %v2456, 6.0
    %v2489 = vmin.f32 %v2457, 6.0
    %v2490 = vmin.f32 %v2458, 6.0
    %v2491 = vmin.f32 %v2459, 6.0
    %v2492 = vmin.f32 %v2460, 6.0
    %v2493 = vmin.f32 %v2461, 6.0
    %v2494 = vmin.f32 %v2462, 6.0
    %v2495 = vmin.f32 %v2463, 6.0
    %v2496 = vmin.f32 %v2464, 6.0
    %v2497 = vmin.f32 %v2465, 6.0
    %v2498 = vmin.f32 %v2466, 6.0
    %v2499 = vmin.f32 %v2467, 6.0
    %v2500 = vmin.f32 %v2468, 6.0
    %v2501 = vmin.f32 %v2469, 6.0
    %v2502 = vmin.f32 %v2470, 6.0
    %v2503 = vmin.f32 %v2471, 6.0
    %v2504 = vmin.f32 %v2472, 6.0
    %v2505 = vmin.f32 %v2473, 6.0
    %v2506 = vmin.f32 %v2474, 6.0
    %v2507 = vmin.f32 %v2475, 6.0
    %v2508 = vadd.f32 %v2476, %v2477
    %v2509 = vadd.f32 %v2508, %v2478
    %v2510 = vadd.f32 %v2509, %v2479
    %v2511 = vadd.f32 %v2510, %v2480
    %v2512 = vadd.f32 %v2511, %v2481
    %v2513 = vadd.f32 %v2512, %v2482
    %v2514 = vadd.f32 %v2513, %v2483
    %v2515 = vrot.slane %v2514, 4
    %v2516 = vadd.f32 %v2514, %v2515
    %v2517 = vrot.slane %v2516, 2
    %v2518 = vadd.f32 %v2516, %v2517
    %v2519 = vrot.slane %v2518, 1
    %v2520 = vadd.f32 %v2518, %v2519
    %v2521 = vmul.f32 %v2520, 0.015625
    %2522 = vst [vmem:[#allocation2] sm:$0x1] %v2521
    %v2523 = vadd.f32 %v2484, %v2485
    %v2524 = vadd.f32 %v2523, %v2486
    %v2525 = vadd.f32 %v2524, %v2487
    %v2526 = vadd.f32 %v2525, %v2488
    %v2527 = vadd.f32 %v2526, %v2489
    %v2528 = vadd.f32 %v2527, %v2490
    %v2529 = vadd.f32 %v2528, %v2491
    %v2530 = vrot.slane %v2529, 4
    %v2531 = vadd.f32 %v2529, %v2530
    %v2532 = vrot.slane %v2531, 2
    %v2533 = vadd.f32 %v2531, %v2532
    %v2534 = vrot.slane %v2533, 1
    %v2535 = vadd.f32 %v2533, %v2534
    %v2536 = vmul.f32 %v2535, 0.015625
    %2537 = vst [vmem:[#allocation2 + $0x1] sm:$0x1] %v2536
    %v2538 = vadd.f32 %v2492, %v2493
    %v2539 = vadd.f32 %v2538, %v2494
    %v2540 = vadd.f32 %v2539, %v2495
    %v2541 = vadd.f32 %v2540, %v2496
    %v2542 = vadd.f32 %v2541, %v2497
    %v2543 = vadd.f32 %v2542, %v2498
    %v2544 = vadd.f32 %v2543, %v2499
    %v2545 = vrot.slane %v2544, 4
    %v2546 = vadd.f32 %v2544, %v2545
    %v2547 = vrot.slane %v2546, 2
    %v2548 = vadd.f32 %v2546, %v2547
    %v2549 = vrot.slane %v2548, 1
    %v2550 = vadd.f32 %v2548, %v2549
    %v2551 = vmul.f32 %v2550, 0.015625
    %2552 = vst [vmem:[#allocation2 + $0x2] sm:$0x1] %v2551
    %v2553 = vadd.f32 %v2500, %v2501
    %v2554 = vadd.f32 %v2553, %v2502
    %v2555 = vadd.f32 %v2554, %v2503
    %v2556 = vadd.f32 %v2555, %v2504
    %v2557 = vadd.f32 %v2556, %v2505
    %v2558 = vadd.f32 %v2557, %v2506
    %v2559 = vadd.f32 %v2558, %v2507
    %v2560 = vrot.slane %v2559, 4
    %v2561 = vadd.f32 %v2559, %v2560
    %v2562 = vrot.slane %v2561, 2
    %v2563 = vadd.f32 %v2561, %v2562
    %v2564 = vrot.slane %v2563, 1
    %v2565 = vadd.f32 %v2563, %v2564
    %v2566 = vmul.f32 %v2565, 0.015625
    %2567 = vst [vmem:[#allocation2 + $0x3] sm:$0x1] %v2566
    %v2568 = vld [vmem:[#allocation2] sm:$0xf]
    %v2569 = vpack.c.bf16 %v2568, %v2568
    %v2570 = vld [vmem:[#allocation8] sm:$0xf]
    %v2571 = vld [vmem:[#allocation8 + $0x4] sm:$0xf]
    %v2572 = vld [vmem:[#allocation8 + $0x8] sm:$0xf]
    %v2573 = vld [vmem:[#allocation8 + $0xc] sm:$0xf]
    %v2574 = vld [vmem:[#allocation8 + $0x10] sm:$0xf]
    %v2575 = vld [vmem:[#allocation8 + $0x14] sm:$0xf]
    %v2576 = vld [vmem:[#allocation8 + $0x18] sm:$0xf]
    %v2577 = vld [vmem:[#allocation8 + $0x1c] sm:$0xf]
    %v2578 = vld [vmem:[#allocation8 + $0x20] sm:$0xf]
    %v2579 = vld [vmem:[#allocation8 + $0x24] sm:$0xf]
    %v2580 = vld [vmem:[#allocation8 + $0x28] sm:$0xf]
    %v2581 = vld [vmem:[#allocation8 + $0x2c] sm:$0xf]
    %v2582 = vld [vmem:[#allocation8 + $0x30] sm:$0xf]
    %v2583 = vld [vmem:[#allocation8 + $0x34] sm:$0xf]
    %v2584 = vld [vmem:[#allocation8 + $0x38] sm:$0xf]
    %v2585 = vld [vmem:[#allocation8 + $0x3c] sm:$0xf]
    %v2586 = vld [vmem:[%s5 + $0x2] sm:$0x1]
    %v2587 = vlaneseq
    %v2588 = vshrl.u32 %v2587, 7
    %v2589 = vsub.s32 0, %v2588
    %v2590 = vrot.slane %v2586, %v2589
    %v2607 = vunpack.c.l.b16 %v2570
    %v2608 = vunpack.c.l.b16 %v2571
    %v2609 = vunpack.c.l.b16 %v2572
    %v2610 = vunpack.c.l.b16 %v2573
    %v2611 = vunpack.c.l.b16 %v2574
    %v2612 = vunpack.c.l.b16 %v2575
    %v2613 = vunpack.c.l.b16 %v2576
    %v2614 = vunpack.c.l.b16 %v2577
    %v2615 = vunpack.c.l.b16 %v2578
    %v2616 = vunpack.c.l.b16 %v2579
    %v2617 = vunpack.c.l.b16 %v2580
    %v2618 = vunpack.c.l.b16 %v2581
    %v2619 = vunpack.c.l.b16 %v2582
    %v2620 = vunpack.c.l.b16 %v2583
    %v2621 = vunpack.c.l.b16 %v2584
    %v2622 = vunpack.c.l.b16 %v2585
    %v2623 = vpack.c.b16 %v2608, %v2607
    %v2624 = vpack.c.b16 %v2610, %v2609
    %v2625 = vpack.c.b16 %v2612, %v2611
    %v2626 = vpack.c.b16 %v2614, %v2613
    %v2627 = vpack.c.b16 %v2616, %v2615
    %v2628 = vpack.c.b16 %v2618, %v2617
    %v2629 = vpack.c.b16 %v2620, %v2619
    %v2630 = vpack.c.b16 %v2622, %v2621
    %2639 = vmatprep.subr.bf16.mxu0 0
    %2640 = vmatpush1.bf16.msra.mxu0 %v2623
    %2641 = vmatprep.subr.bf16.mxu0 0
    %2642 = vmatpush1.bf16.msra.mxu0 %v2624
    %2643 = vmatprep.subr.bf16.mxu0 0
    %2644 = vmatpush1.bf16.msra.mxu0 %v2625
    %2645 = vmatprep.subr.bf16.mxu0 0
    %2646 = vmatpush1.bf16.msra.mxu0 %v2626
    %2647 = vmatprep.subr.bf16.mxu0 0
    %2648 = vmatpush1.bf16.msra.mxu0 %v2627
    %2649 = vmatprep.subr.bf16.mxu0 0
    %2650 = vmatpush1.bf16.msra.mxu0 %v2628
    %2651 = vmatprep.subr.bf16.mxu0 0
    %2652 = vmatpush1.bf16.msra.mxu0 %v2629
    %2653 = vmatprep.subr.bf16.mxu0 0
    %2654 = vmatpush1.bf16.msra.mxu0 %v2630
    %2655 = vmatprep.subr.bf16.mxu0 0
    %2656 = vmatpush1.bf16.msra.mxu0 0
    %2657 = vmatprep.subr.bf16.mxu0 0
    %2658 = vmatpush1.bf16.msra.mxu0 0
    %2659 = vmatprep.subr.bf16.mxu0 0
    %2660 = vmatpush1.bf16.msra.mxu0 0
    %2661 = vmatprep.subr.bf16.mxu0 0
    %2662 = vmatpush1.bf16.msra.mxu0 0
    %2663 = vmatprep.subr.bf16.mxu0 0
    %2664 = vmatpush1.bf16.msra.mxu0 0
    %2665 = vmatprep.subr.bf16.mxu0 0
    %2666 = vmatpush1.bf16.msra.mxu0 0
    %2667 = vmatprep.subr.bf16.mxu0 0
    %2668 = vmatpush1.bf16.msra.mxu0 0
    %2669 = vmatprep.subr.bf16.mxu0 0
    %2670 = vmatpush1.bf16.msra.mxu0 0
    %2671 = vmatprep.mubr.bf16.mxu0 0
    %2672 = vmatmul.mubr.bf16.gmra.mrb[0].mxu0 %v2569
    %v2673 = vpop.f32.mrb[0].mxu0
    %v2674 = vadd.f32 %v2590, %v2673
    %v2675 = vpop.f32.mrb[0].mxu0
    %v2676 = vpop.f32.mrb[0].mxu0
    %v2677 = vpop.f32.mrb[0].mxu0
    %2678 = vdwg.mxu0
    %v2679 = vld [vmem:[%s5 + $0x3] sm:$0x1]
    %v2680 = vlaneseq
    %v2681 = vshrl.u32 %v2680, 7
    %v2682 = vsub.s32 0, %v2681
    %v2683 = vrot.slane %v2679, %v2682
    %v2684 = vmul.f32 %v2674, %v2683
    %v2685 = vld [vmem:[%s5 + $0x4] sm:$0x1]
    %v2686 = vlaneseq
    %v2687 = vshrl.u32 %v2686, 7
    %v2688 = vsub.s32 0, %v2687
    %v2689 = vrot.slane %v2685, %v2688
    %v2690 = vadd.f32 %v2684, %v2689
    %v2691 = vmax.f32 %v2690, 0.0
    %v2692 = vpack.c.bf16 %v2691, %v2691
    %v2693 = vld [vmem:[#allocation9] sm:$0xf]
    %v2694 = vld [vmem:[#allocation9 + $0x4] sm:$0xf]
    %v2695 = vld [vmem:[#allocation9 + $0x8] sm:$0xf]
    %v2696 = vld [vmem:[#allocation9 + $0xc] sm:$0xf]
    %v2697 = vld [vmem:[#allocation9 + $0x10] sm:$0xf]
    %v2698 = vld [vmem:[#allocation9 + $0x14] sm:$0xf]
    %v2699 = vld [vmem:[#allocation9 + $0x18] sm:$0xf]
    %v2700 = vld [vmem:[#allocation9 + $0x1c] sm:$0xf]
    %v2701 = vld [vmem:[#allocation9 + $0x20] sm:$0xf]
    %v2702 = vld [vmem:[#allocation9 + $0x24] sm:$0xf]
    %v2703 = vld [vmem:[#allocation9 + $0x28] sm:$0xf]
    %v2704 = vld [vmem:[#allocation9 + $0x2c] sm:$0xf]
    %v2705 = vld [vmem:[#allocation9 + $0x30] sm:$0xf]
    %v2706 = vld [vmem:[#allocation9 + $0x34] sm:$0xf]
    %v2707 = vld [vmem:[#allocation9 + $0x38] sm:$0xf]
    %v2708 = vld [vmem:[#allocation9 + $0x3c] sm:$0xf]
    %v2709 = vld [vmem:[%s5 + $0x5] sm:$0x1]
    %v2710 = vlaneseq
    %v2711 = vshrl.u32 %v2710, 7
    %v2712 = vsub.s32 0, %v2711
    %v2713 = vrot.slane %v2709, %v2712
    %v2730 = vunpack.c.l.b16 %v2693
    %v2731 = vunpack.c.l.b16 %v2694
    %v2732 = vunpack.c.l.b16 %v2695
    %v2733 = vunpack.c.l.b16 %v2696
    %v2734 = vunpack.c.l.b16 %v2697
    %v2735 = vunpack.c.l.b16 %v2698
    %v2736 = vunpack.c.l.b16 %v2699
    %v2737 = vunpack.c.l.b16 %v2700
    %v2738 = vunpack.c.l.b16 %v2701
    %v2739 = vunpack.c.l.b16 %v2702
    %v2740 = vunpack.c.l.b16 %v2703
    %v2741 = vunpack.c.l.b16 %v2704
    %v2742 = vunpack.c.l.b16 %v2705
    %v2743 = vunpack.c.l.b16 %v2706
    %v2744 = vunpack.c.l.b16 %v2707
    %v2745 = vunpack.c.l.b16 %v2708
    %v2746 = vpack.c.b16 %v2731, %v2730
    %v2747 = vpack.c.b16 %v2733, %v2732
    %v2748 = vpack.c.b16 %v2735, %v2734
    %v2749 = vpack.c.b16 %v2737, %v2736
    %v2750 = vpack.c.b16 %v2739, %v2738
    %v2751 = vpack.c.b16 %v2741, %v2740
    %v2752 = vpack.c.b16 %v2743, %v2742
    %v2753 = vpack.c.b16 %v2745, %v2744
    %2762 = vmatprep.subr.bf16.mxu0 0
    %2763 = vmatpush1.bf16.msra.mxu0 %v2746
    %2764 = vmatprep.subr.bf16.mxu0 0
    %2765 = vmatpush1.bf16.msra.mxu0 %v2747
    %2766 = vmatprep.subr.bf16.mxu0 0
    %2767 = vmatpush1.bf16.msra.mxu0 %v2748
    %2768 = vmatprep.subr.bf16.mxu0 0
    %2769 = vmatpush1.bf16.msra.mxu0 %v2749
    %2770 = vmatprep.subr.bf16.mxu0 0
    %2771 = vmatpush1.bf16.msra.mxu0 %v2750
    %2772 = vmatprep.subr.bf16.mxu0 0
    %2773 = vmatpush1.bf16.msra.mxu0 %v2751
    %2774 = vmatprep.subr.bf16.mxu0 0
    %2775 = vmatpush1.bf16.msra.mxu0 %v2752
    %2776 = vmatprep.subr.bf16.mxu0 0
    %2777 = vmatpush1.bf16.msra.mxu0 %v2753
    %2778 = vmatprep.subr.bf16.mxu0 0
    %2779 = vmatpush1.bf16.msra.mxu0 0
    %2780 = vmatprep.subr.bf16.mxu0 0
    %2781 = vmatpush1.bf16.msra.mxu0 0
    %2782 = vmatprep.subr.bf16.mxu0 0
    %2783 = vmatpush1.bf16.msra.mxu0 0
    %2784 = vmatprep.subr.bf16.mxu0 0
    %2785 = vmatpush1.bf16.msra.mxu0 0
    %2786 = vmatprep.subr.bf16.mxu0 0
    %2787 = vmatpush1.bf16.msra.mxu0 0
    %2788 = vmatprep.subr.bf16.mxu0 0
    %2789 = vmatpush1.bf16.msra.mxu0 0
    %2790 = vmatprep.subr.bf16.mxu0 0
    %2791 = vmatpush1.bf16.msra.mxu0 0
    %2792 = vmatprep.subr.bf16.mxu0 0
    %2793 = vmatpush1.bf16.msra.mxu0 0
    %2794 = vmatprep.mubr.bf16.mxu0 0
    %2795 = vmatmul.mubr.bf16.gmra.mrb[0].mxu0 %v2692
    %v2796 = vpop.f32.mrb[0].mxu0
    %v2797 = vadd.f32 %v2713, %v2796
    %v2798 = vpop.f32.mrb[0].mxu0
    %v2799 = vpop.f32.mrb[0].mxu0
    %v2800 = vpop.f32.mrb[0].mxu0
    %2801 = vdwg.mxu0
    %v2802 = vld [vmem:[%s5 + $0x6] sm:$0x1]
    %v2803 = vlaneseq
    %v2804 = vshrl.u32 %v2803, 7
    %v2805 = vsub.s32 0, %v2804
    %v2806 = vrot.slane %v2802, %v2805
    %v2807 = vmul.f32 %v2797, %v2806
    %v2808 = vld [vmem:[%s5 + $0x7] sm:$0x1]
    %v2809 = vlaneseq
    %v2810 = vshrl.u32 %v2809, 7
    %v2811 = vsub.s32 0, %v2810
    %v2812 = vrot.slane %v2808, %v2811
    %v2813 = vadd.f32 %v2807, %v2812
    %v2814 = vmax.f32 %v2813, 0.0
    %v2815 = vpack.c.bf16 %v2814, %v2814
    %v2816 = vld [vmem:[#allocation11] sm:$0xf]
    %v2817 = vld [vmem:[#allocation11 + $0x4] sm:$0xf]
    %v2818 = vld [vmem:[#allocation11 + $0x8] sm:$0xf]
    %v2819 = vld [vmem:[#allocation11 + $0xc] sm:$0xf]
    %v2820 = vld [vmem:[#allocation11 + $0x10] sm:$0xf]
    %v2821 = vld [vmem:[#allocation11 + $0x14] sm:$0xf]
    %v2822 = vld [vmem:[#allocation11 + $0x18] sm:$0xf]
    %v2823 = vld [vmem:[#allocation11 + $0x1c] sm:$0xf]
    %v2824 = vld [vmem:[#allocation11 + $0x20] sm:$0xf]
    %v2825 = vld [vmem:[#allocation11 + $0x24] sm:$0xf]
    %v2826 = vld [vmem:[#allocation11 + $0x28] sm:$0xf]
    %v2827 = vld [vmem:[#allocation11 + $0x2c] sm:$0xf]
    %v2828 = vld [vmem:[#allocation11 + $0x30] sm:$0xf]
    %v2829 = vld [vmem:[#allocation11 + $0x34] sm:$0xf]
    %v2830 = vld [vmem:[#allocation11 + $0x38] sm:$0xf]
    %v2831 = vld [vmem:[#allocation11 + $0x3c] sm:$0xf]
    %v2832 = vld [vmem:[%s5 + $0x8] sm:$0x1]
    %v2833 = vlaneseq
    %v2834 = vshrl.u32 %v2833, 7
    %v2835 = vsub.s32 0, %v2834
    %v2836 = vrot.slane %v2832, %v2835
    %v2853 = vunpack.c.l.b16 %v2816
    %v2854 = vunpack.c.l.b16 %v2817
    %v2855 = vunpack.c.l.b16 %v2818
    %v2856 = vunpack.c.l.b16 %v2819
    %v2857 = vunpack.c.l.b16 %v2820
    %v2858 = vunpack.c.l.b16 %v2821
    %v2859 = vunpack.c.l.b16 %v2822
    %v2860 = vunpack.c.l.b16 %v2823
    %v2861 = vunpack.c.l.b16 %v2824
    %v2862 = vunpack.c.l.b16 %v2825
    %v2863 = vunpack.c.l.b16 %v2826
    %v2864 = vunpack.c.l.b16 %v2827
    %v2865 = vunpack.c.l.b16 %v2828
    %v2866 = vunpack.c.l.b16 %v2829
    %v2867 = vunpack.c.l.b16 %v2830
    %v2868 = vunpack.c.l.b16 %v2831
    %v2869 = vpack.c.b16 %v2854, %v2853
    %v2870 = vpack.c.b16 %v2856, %v2855
    %v2871 = vpack.c.b16 %v2858, %v2857
    %v2872 = vpack.c.b16 %v2860, %v2859
    %v2873 = vpack.c.b16 %v2862, %v2861
    %v2874 = vpack.c.b16 %v2864, %v2863
    %v2875 = vpack.c.b16 %v2866, %v2865
    %v2876 = vpack.c.b16 %v2868, %v2867
    %2885 = vmatprep.subr.bf16.mxu0 0
    %2886 = vmatpush1.bf16.msra.mxu0 %v2869
    %2887 = vmatprep.subr.bf16.mxu0 0
    %2888 = vmatpush1.bf16.msra.mxu0 %v2870
    %2889 = vmatprep.subr.bf16.mxu0 0
    %2890 = vmatpush1.bf16.msra.mxu0 %v2871
    %2891 = vmatprep.subr.bf16.mxu0 0
    %2892 = vmatpush1.bf16.msra.mxu0 %v2872
    %2893 = vmatprep.subr.bf16.mxu0 0
    %2894 = vmatpush1.bf16.msra.mxu0 %v2873
    %2895 = vmatprep.subr.bf16.mxu0 0
    %2896 = vmatpush1.bf16.msra.mxu0 %v2874
    %2897 = vmatprep.subr.bf16.mxu0 0
    %2898 = vmatpush1.bf16.msra.mxu0 %v2875
    %2899 = vmatprep.subr.bf16.mxu0 0
    %2900 = vmatpush1.bf16.msra.mxu0 %v2876
    %2901 = vmatprep.subr.bf16.mxu0 0
    %2902 = vmatpush1.bf16.msra.mxu0 0
    %2903 = vmatprep.subr.bf16.mxu0 0
    %2904 = vmatpush1.bf16.msra.mxu0 0
    %2905 = vmatprep.subr.bf16.mxu0 0
    %2906 = vmatpush1.bf16.msra.mxu0 0
    %2907 = vmatprep.subr.bf16.mxu0 0
    %2908 = vmatpush1.bf16.msra.mxu0 0
    %2909 = vmatprep.subr.bf16.mxu0 0
    %2910 = vmatpush1.bf16.msra.mxu0 0
    %2911 = vmatprep.subr.bf16.mxu0 0
    %2912 = vmatpush1.bf16.msra.mxu0 0
    %2913 = vmatprep.subr.bf16.mxu0 0
    %2914 = vmatpush1.bf16.msra.mxu0 0
    %2915 = vmatprep.subr.bf16.mxu0 0
    %2916 = vmatpush1.bf16.msra.mxu0 0
    %2917 = vmatprep.mubr.bf16.mxu0 0
    %2918 = vmatmul.mubr.bf16.gmra.mrb[0].mxu0 %v2815
    %v2919 = vpop.f32.mrb[0].mxu0
    %v2920 = vadd.f32 %v2836, %v2919
    %v2921 = vpop.f32.mrb[0].mxu0
    %v2922 = vpop.f32.mrb[0].mxu0
    %v2923 = vpop.f32.mrb[0].mxu0
    %2924 = vdwg.mxu0
    %2925 = vst [vmem:[#allocation12] sm:$0xf] %v2920
    // Predicated region
    $region46: #{tpu_custom_call.1} parent=1 // pred_check
      _
    $region47: #{tpu_custom_call.1} parent=1 // pred_check_branch
      %2927 = sbr.rel (0) target = $region49
    $region48: #{tpu_custom_call.1} parent=1 // pred_region
      %s2929 = ssub.s32 64, 64
      %2930 = vsyncadd [#allocation5], %s2929
      %s2932 = sshll.u32 [#allocation12], 4
      %s2933 = int_to_ptr.vmem [resolvable:$true] %s2932
      %2935 = dma.vmem_to_hbm [thread:$0]  %s2933, 64, %s6, [#allocation5]
    $region49: #{tpu_custom_call.1} parent=1 // pred_fallthru
      _
    // Predicated region
    $region50: #{tpu_custom_call.1} parent=1 // pred_check
      _
    $region51: #{tpu_custom_call.1} parent=1 // pred_check_branch
      %2937 = sbr.rel (0) target = $region53
    $region52: #{tpu_custom_call.1} parent=1 // pred_region
      %2938 = dma.done [#allocation5], 64
    $region53: #{tpu_custom_call.1} parent=1 // pred_fallthru
      _
    %2939 = vsyncpa [#allocation4], 1
    %2940 = vsyncpa [#allocation7], 1
    %2941 = vsyncpa [#allocation10], 1
    %2942 = vsyncpa [#allocation5], 1

</llo_original>
